<compile_context>
chip_gen: v7x
topology: tpu7x:2x2x1
jax: 0.10.0
libtpu: 0.0.40
codegen_flags: <defaults>
</compile_context>

<pallas_src>
import functools
import math

import jax
import jax.numpy as jnp
from jax import lax
from jax.experimental import pallas as pl
from jax.experimental.pallas import tpu as pltpu


_LANE = 128          # TPU lane width
_LANE_SUB_MAX = 512  # lanes processed per in-kernel sub-iteration (vreg budget)
_TB_MAX = 4096       # max lanes (batch rows) per grid step
_CHUNK = 16          # hidden rows per fused chunk (acc = (16, <=512) = 8 vregs)


def _round_up(n, m):
    return ((n + m - 1) // m) * m


def _cdiv(n, m):
    return (n + m - 1) // m


def _actor_mlp_kernel(xT_ref, wpack_ref, b2_ref, muT_ref, *, lane_sub, chunk):
    # xT:    (3, TB)      observations, batch along lanes
    # wpack: (256, 8)     lanes 0..2 = w1 columns, lane 3 = b1, lane 4 = w2
    # b2:    (1, 1)       layer-2 bias, SMEM scalar
    # muT:   (1, TB)      output, batch along lanes (lane-dense stores)
    tb = xT_ref.shape[1]
    hidden = wpack_ref.shape[0]
    nsub = tb // lane_sub
    n_chunks = hidden // chunk
    b2 = b2_ref[0, 0]

    @pl.loop(0, nsub)                       # rolled: each iteration is "big"
    def _(s):
        col = pl.multiple_of(s * lane_sub, lane_sub)
        xs = xT_ref[:, pl.ds(col, lane_sub)]        # (3, lane_sub), one load
        x0 = xs[0:1, :]
        x1 = xs[1:2, :]
        x2 = xs[2:3, :]

        # Fused layer1+ReLU+layer2, chunked over the hidden dim.  The Python
        # loop with static ref slices is the fully-unrolled equivalent of
        # lax.fori_loop(..., unroll=True): straight-line code, live values
        # bounded by the acc dependency, no (256, TB) hidden tensor ever built.
        acc = jnp.zeros((chunk, lane_sub), jnp.float32)
        for c in range(n_chunks):
            r0 = c * chunk
            wp = wpack_ref[r0:r0 + chunk, :]        # (chunk, 8) static view load
            pre = (wp[:, 0:1] * x0
                   + wp[:, 1:2] * x1
                   + wp[:, 2:3] * x2
                   + wp[:, 3:4])                    # (chunk, lane_sub)
            acc = acc + jnp.maximum(pre, 0.0) * wp[:, 4:5]

        # Final cross-sublane reduce (XLU), bias, tanh (EUP), scale by 2.
        o = jnp.sum(acc, axis=0, keepdims=True) + b2           # (1, lane_sub)
        muT_ref[:, pl.ds(col, lane_sub)] = (2.0 * jnp.tanh(o)).astype(
            muT_ref.dtype)


@functools.partial(jax.jit, static_argnames=("x_is_soa",))
def actor_forward(x, params, x_is_soa=False):
    """Returns (mu, sigma) matching Actor.forward semantics.

    x: (B, 3) float32  (or (3, B) if x_is_soa=True, skipping the transpose)
    mu: (B, 1) float32,  sigma: scalar float32 (the learned log-std parameter)
    """
    w1, b1, w2, b2, sigma = (
        params["w1"], params["b1"], params["w2"], params["b2"], params["sigma"]
    )
    hidden = w1.shape[1]                           # 256
    assert hidden % _CHUNK == 0

    B = x.shape[1] if x_is_soa else x.shape[0]

    # ---- tile-size / grid selection -------------------------------------
    lane_b = _round_up(max(B, 1), _LANE)
    grid_n = _cdiv(lane_b, _TB_MAX)
    if lane_b >= 2 * _LANE:
        grid_n = max(grid_n, 2)          # v7x: >=2 tiles so both TCs get work
    tb = _round_up(_cdiv(lane_b, grid_n), _LANE)
    # Prefer 512-lane-aligned tiles (bigger in-kernel sub-tiles) only if that
    # costs <= ~25% extra padded lanes; otherwise keep the tight 128-aligned tb.
    tb512 = _round_up(tb, _LANE_SUB_MAX)
    if grid_n * (tb512 - tb) * 4 <= lane_b:
        tb = tb512
    b_pad = grid_n * tb
    lane_sub = math.gcd(tb, _LANE_SUB_MAX)          # 128, 256 or 512; divides tb

    # ---- layout plumbing (cheap XLA ops, fused under jit) ----------------
    if x_is_soa:
        xT = jnp.pad(x, ((0, 0), (0, b_pad - B)))               # (3, B_pad)
    else:
        xT = jnp.pad(x, ((0, b_pad - B), (0, 0))).T             # (3, B_pad)

    # Pack all resident weights into one (hidden, 8) slab: one DMA, one buffer.
    wpack = jnp.concatenate(
        [w1.T,                                                   # lanes 0..2
         b1.reshape(hidden, 1),                                  # lane 3
         w2.reshape(hidden, 1),                                  # lane 4
         jnp.zeros((hidden, 3), jnp.float32)], axis=1)           # pad to 8
    b2s = b2.reshape(1, 1)                                       # SMEM scalar

    cost = pl.CostEstimate(
        flops=2 * b_pad * hidden * 3 + 2 * b_pad * hidden,       # layer1+layer2
        transcendentals=b_pad,                                   # tanh / sample
        bytes_accessed=(b_pad * 3 + b_pad + grid_n * hidden * 8 + 1) * 4,
    )

    kernel = functools.partial(_actor_mlp_kernel, lane_sub=lane_sub,
                               chunk=_CHUNK)

    muT = pl.pallas_call(
        kernel,
        out_shape=jax.ShapeDtypeStruct((1, b_pad), jnp.float32),
        grid_spec=pl.GridSpec(
            grid=(grid_n,),
            in_specs=[
                pl.BlockSpec((3, tb), lambda i: (0, i)),             # x tile
                pl.BlockSpec((hidden, 8), lambda i: (0, 0)),         # weights
                pl.BlockSpec(memory_space=pltpu.MemorySpace.SMEM),   # b2
            ],
            out_specs=pl.BlockSpec((1, tb), lambda i: (0, i)),
        ),
        compiler_params=pltpu.CompilerParams(
            dimension_semantics=("parallel",),   # shard batch tiles on v7x TCs
        ),
        cost_estimate=cost,
    )(xT, wpack, b2s)

    mu = muT[:, :B].T if x_is_soa else muT.T[:B]                 # (B, 1)
    return mu, sigma


def init_params(key):
    """Deterministic init mimicking PyTorch nn.Linear default U(-1/sqrt(fan_in), +)."""
    k1, k2, k3, k4 = jax.random.split(key, 4)
    bound1 = 1.0 / jnp.sqrt(3.0)     # fan_in = 3
    bound2 = 1.0 / jnp.sqrt(256.0)   # fan_in = 256
    w1 = jax.random.uniform(k1, (3, 256), jnp.float32, -bound1, bound1)
    b1 = jax.random.uniform(k2, (1, 256), jnp.float32, -bound1, bound1)
    w2 = jax.random.uniform(k3, (256, 1), jnp.float32, -bound2, bound2)
    b2 = jax.random.uniform(k4, (1, 1), jnp.float32, -bound2, bound2)
    sigma = jnp.log(jnp.float32(0.6))   # nn.Parameter(log(0.6)), scalar
    return {"w1": w1, "b1": b1, "w2": w2, "b2": b2, "sigma": sigma}


def _reference_mu(x, params):
    h = jnp.maximum(x @ params["w1"] + params["b1"], 0.0)
    return 2.0 * jnp.tanh(h @ params["w2"] + params["b2"])


if __name__ == "__main__":
    key = jax.random.PRNGKey(0)
    pkey, xkey_a, xkey_b = jax.random.split(key, 3)
    params = init_params(pkey)
    log_sigma_ref = jnp.log(jnp.float32(0.6))

    # Small batch (single tile) and a batch that exercises grid_n=2 plus the
    # in-kernel lane-sub-tile loop.
    for B in (8, 600):
        x = jax.random.normal(jax.random.fold_in(xkey_a, B), (B, 3), jnp.float32)
        mu, sigma = actor_forward(x, params)
        jax.block_until_ready(mu)
        jax.block_until_ready(sigma)
        mu_ref = _reference_mu(x, params)
        assert mu.shape == (B, 1)
        assert jnp.allclose(mu, mu_ref, atol=1e-5, rtol=1e-4)
        assert jnp.allclose(sigma, log_sigma_ref)

    # SoA fast path: caller supplies observations already as (3, B) — no
    # wrapper-side transpose / extra HBM round trip.
    x_soa = jax.random.normal(xkey_b, (3, 16), jnp.float32)
    mu_soa, sigma_soa = actor_forward(x_soa, params, x_is_soa=True)
    jax.block_until_ready(mu_soa)
    assert mu_soa.shape == (16, 1)
    assert jnp.allclose(mu_soa, _reference_mu(x_soa.T, params),
                        atol=1e-5, rtol=1e-4)
    assert jnp.allclose(sigma_soa, log_sigma_ref)

    print("KERNEL_OK")
</pallas_src>

<mosaic_0001>
module attributes {stable_mosaic.version = 11 : i64} {
  func.func @_actor_mlp_kernel(%arg0: i32, %arg1: memref<3x128xf32, #tpu.memory_space<vmem>>, %arg2: memref<256x8xf32, #tpu.memory_space<vmem>>, %arg3: memref<1x1xf32, #tpu.memory_space<smem>>, %arg4: memref<1x128xf32, #tpu.memory_space<vmem>>) attributes {dimension_semantics = [#tpu.dimension_semantics<parallel>], iteration_bounds = array<i64: 1>, scalar_prefetch = 0 : i64, scratch_operands = 0 : i64, tpu.core_type = #tpu.core_type<tc>, window_params = [{transform_indices = @transform_0, window_bounds = array<i64: 3, 128>}, {pipeline_mode = #tpu.pipeline_mode<synchronous>, transform_indices = @transform_1, window_bounds = array<i64: 256, 8>}, {transform_indices = @transform_2, window_bounds = array<i64: 1, 1>}, {transform_indices = @transform_3, window_bounds = array<i64: 1, 128>}]} {
    %c0 = arith.constant 0 : index
    %c0_0 = arith.constant 0 : index
    %0 = memref.load %arg3[%c0, %c0_0] : memref<1x1xf32, #tpu.memory_space<smem>>
    %c0_i32 = arith.constant 0 : i32
    %c1_i32 = arith.constant 1 : i32
    %1 = arith.muli %c0_i32, %c1_i32 : i32
    %c0_i32_1 = arith.constant 0 : i32
    %2 = arith.addi %c0_i32_1, %1 : i32
    %c128_i32 = arith.constant 128 : i32
    %3 = arith.muli %2, %c128_i32 : i32
    %4 = tpu.assume_multiple %3, 128 : i32
    %c0_2 = arith.constant 0 : index
    %5 = arith.index_cast %4 : i32 to index
    %6 = vector.load %arg1[%c0_2, %5] : memref<3x128xf32, #tpu.memory_space<vmem>>, vector<3x128xf32>
    %7 = vector.extract_strided_slice %6 {offsets = [0, 0], sizes = [1, 128], strides = [1, 1]} : vector<3x128xf32> to vector<1x128xf32>
    %8 = vector.extract_strided_slice %6 {offsets = [1, 0], sizes = [1, 128], strides = [1, 1]} : vector<3x128xf32> to vector<1x128xf32>
    %9 = vector.extract_strided_slice %6 {offsets = [2, 0], sizes = [1, 128], strides = [1, 1]} : vector<3x128xf32> to vector<1x128xf32>
    %cst = arith.constant 0.000000e+00 : f32
    %10 = vector.broadcast %cst : f32 to vector<16x128xf32>
    %c0_3 = arith.constant 0 : index
    %c0_4 = arith.constant 0 : index
    %11 = vector.load %arg2[%c0_3, %c0_4] : memref<256x8xf32, #tpu.memory_space<vmem>>, vector<16x8xf32>
    %12 = vector.extract_strided_slice %11 {offsets = [0, 0], sizes = [16, 1], strides = [1, 1]} : vector<16x8xf32> to vector<16x1xf32>
    %13 = vector.broadcast %12 : vector<16x1xf32> to vector<16x128xf32>
    %14 = vector.broadcast %7 : vector<1x128xf32> to vector<16x128xf32>
    %15 = arith.mulf %13, %14 : vector<16x128xf32>
    %16 = vector.extract_strided_slice %11 {offsets = [0, 1], sizes = [16, 1], strides = [1, 1]} : vector<16x8xf32> to vector<16x1xf32>
    %17 = vector.broadcast %16 : vector<16x1xf32> to vector<16x128xf32>
    %18 = vector.broadcast %8 : vector<1x128xf32> to vector<16x128xf32>
    %19 = arith.mulf %17, %18 : vector<16x128xf32>
    %20 = arith.addf %15, %19 : vector<16x128xf32>
    %21 = vector.extract_strided_slice %11 {offsets = [0, 2], sizes = [16, 1], strides = [1, 1]} : vector<16x8xf32> to vector<16x1xf32>
    %22 = vector.broadcast %21 : vector<16x1xf32> to vector<16x128xf32>
    %23 = vector.broadcast %9 : vector<1x128xf32> to vector<16x128xf32>
    %24 = arith.mulf %22, %23 : vector<16x128xf32>
    %25 = arith.addf %20, %24 : vector<16x128xf32>
    %26 = vector.extract_strided_slice %11 {offsets = [0, 3], sizes = [16, 1], strides = [1, 1]} : vector<16x8xf32> to vector<16x1xf32>
    %27 = vector.broadcast %26 : vector<16x1xf32> to vector<16x128xf32>
    %28 = arith.addf %25, %27 : vector<16x128xf32>
    %cst_5 = arith.constant 0.000000e+00 : f32
    %29 = vector.broadcast %cst_5 : f32 to vector<16x128xf32>
    %30 = arith.maximumf %28, %29 : vector<16x128xf32>
    %31 = vector.extract_strided_slice %11 {offsets = [0, 4], sizes = [16, 1], strides = [1, 1]} : vector<16x8xf32> to vector<16x1xf32>
    %32 = vector.broadcast %31 : vector<16x1xf32> to vector<16x128xf32>
    %33 = arith.mulf %30, %32 : vector<16x128xf32>
    %34 = arith.addf %10, %33 : vector<16x128xf32>
    %c16 = arith.constant 16 : index
    %c0_6 = arith.constant 0 : index
    %35 = vector.load %arg2[%c16, %c0_6] : memref<256x8xf32, #tpu.memory_space<vmem>>, vector<16x8xf32>
    %36 = vector.extract_strided_slice %35 {offsets = [0, 0], sizes = [16, 1], strides = [1, 1]} : vector<16x8xf32> to vector<16x1xf32>
    %37 = vector.broadcast %36 : vector<16x1xf32> to vector<16x128xf32>
    %38 = vector.broadcast %7 : vector<1x128xf32> to vector<16x128xf32>
    %39 = arith.mulf %37, %38 : vector<16x128xf32>
    %40 = vector.extract_strided_slice %35 {offsets = [0, 1], sizes = [16, 1], strides = [1, 1]} : vector<16x8xf32> to vector<16x1xf32>
    %41 = vector.broadcast %40 : vector<16x1xf32> to vector<16x128xf32>
    %42 = vector.broadcast %8 : vector<1x128xf32> to vector<16x128xf32>
    %43 = arith.mulf %41, %42 : vector<16x128xf32>
    %44 = arith.addf %39, %43 : vector<16x128xf32>
    %45 = vector.extract_strided_slice %35 {offsets = [0, 2], sizes = [16, 1], strides = [1, 1]} : vector<16x8xf32> to vector<16x1xf32>
    %46 = vector.broadcast %45 : vector<16x1xf32> to vector<16x128xf32>
    %47 = vector.broadcast %9 : vector<1x128xf32> to vector<16x128xf32>
    %48 = arith.mulf %46, %47 : vector<16x128xf32>
    %49 = arith.addf %44, %48 : vector<16x128xf32>
    %50 = vector.extract_strided_slice %35 {offsets = [0, 3], sizes = [16, 1], strides = [1, 1]} : vector<16x8xf32> to vector<16x1xf32>
    %51 = vector.broadcast %50 : vector<16x1xf32> to vector<16x128xf32>
    %52 = arith.addf %49, %51 : vector<16x128xf32>
    %cst_7 = arith.constant 0.000000e+00 : f32
    %53 = vector.broadcast %cst_7 : f32 to vector<16x128xf32>
    %54 = arith.maximumf %52, %53 : vector<16x128xf32>
    %55 = vector.extract_strided_slice %35 {offsets = [0, 4], sizes = [16, 1], strides = [1, 1]} : vector<16x8xf32> to vector<16x1xf32>
    %56 = vector.broadcast %55 : vector<16x1xf32> to vector<16x128xf32>
    %57 = arith.mulf %54, %56 : vector<16x128xf32>
    %58 = arith.addf %34, %57 : vector<16x128xf32>
    %c32 = arith.constant 32 : index
    %c0_8 = arith.constant 0 : index
    %59 = vector.load %arg2[%c32, %c0_8] : memref<256x8xf32, #tpu.memory_space<vmem>>, vector<16x8xf32>
    %60 = vector.extract_strided_slice %59 {offsets = [0, 0], sizes = [16, 1], strides = [1, 1]} : vector<16x8xf32> to vector<16x1xf32>
    %61 = vector.broadcast %60 : vector<16x1xf32> to vector<16x128xf32>
    %62 = vector.broadcast %7 : vector<1x128xf32> to vector<16x128xf32>
    %63 = arith.mulf %61, %62 : vector<16x128xf32>
    %64 = vector.extract_strided_slice %59 {offsets = [0, 1], sizes = [16, 1], strides = [1, 1]} : vector<16x8xf32> to vector<16x1xf32>
    %65 = vector.broadcast %64 : vector<16x1xf32> to vector<16x128xf32>
    %66 = vector.broadcast %8 : vector<1x128xf32> to vector<16x128xf32>
    %67 = arith.mulf %65, %66 : vector<16x128xf32>
    %68 = arith.addf %63, %67 : vector<16x128xf32>
    %69 = vector.extract_strided_slice %59 {offsets = [0, 2], sizes = [16, 1], strides = [1, 1]} : vector<16x8xf32> to vector<16x1xf32>
    %70 = vector.broadcast %69 : vector<16x1xf32> to vector<16x128xf32>
    %71 = vector.broadcast %9 : vector<1x128xf32> to vector<16x128xf32>
    %72 = arith.mulf %70, %71 : vector<16x128xf32>
    %73 = arith.addf %68, %72 : vector<16x128xf32>
    %74 = vector.extract_strided_slice %59 {offsets = [0, 3], sizes = [16, 1], strides = [1, 1]} : vector<16x8xf32> to vector<16x1xf32>
    %75 = vector.broadcast %74 : vector<16x1xf32> to vector<16x128xf32>
    %76 = arith.addf %73, %75 : vector<16x128xf32>
    %cst_9 = arith.constant 0.000000e+00 : f32
    %77 = vector.broadcast %cst_9 : f32 to vector<16x128xf32>
    %78 = arith.maximumf %76, %77 : vector<16x128xf32>
    %79 = vector.extract_strided_slice %59 {offsets = [0, 4], sizes = [16, 1], strides = [1, 1]} : vector<16x8xf32> to vector<16x1xf32>
    %80 = vector.broadcast %79 : vector<16x1xf32> to vector<16x128xf32>
    %81 = arith.mulf %78, %80 : vector<16x128xf32>
    %82 = arith.addf %58, %81 : vector<16x128xf32>
    %c48 = arith.constant 48 : index
    %c0_10 = arith.constant 0 : index
    %83 = vector.load %arg2[%c48, %c0_10] : memref<256x8xf32, #tpu.memory_space<vmem>>, vector<16x8xf32>
    %84 = vector.extract_strided_slice %83 {offsets = [0, 0], sizes = [16, 1], strides = [1, 1]} : vector<16x8xf32> to vector<16x1xf32>
    %85 = vector.broadcast %84 : vector<16x1xf32> to vector<16x128xf32>
    %86 = vector.broadcast %7 : vector<1x128xf32> to vector<16x128xf32>
    %87 = arith.mulf %85, %86 : vector<16x128xf32>
    %88 = vector.extract_strided_slice %83 {offsets = [0, 1], sizes = [16, 1], strides = [1, 1]} : vector<16x8xf32> to vector<16x1xf32>
    %89 = vector.broadcast %88 : vector<16x1xf32> to vector<16x128xf32>
    %90 = vector.broadcast %8 : vector<1x128xf32> to vector<16x128xf32>
    %91 = arith.mulf %89, %90 : vector<16x128xf32>
    %92 = arith.addf %87, %91 : vector<16x128xf32>
    %93 = vector.extract_strided_slice %83 {offsets = [0, 2], sizes = [16, 1], strides = [1, 1]} : vector<16x8xf32> to vector<16x1xf32>
    %94 = vector.broadcast %93 : vector<16x1xf32> to vector<16x128xf32>
    %95 = vector.broadcast %9 : vector<1x128xf32> to vector<16x128xf32>
    %96 = arith.mulf %94, %95 : vector<16x128xf32>
    %97 = arith.addf %92, %96 : vector<16x128xf32>
    %98 = vector.extract_strided_slice %83 {offsets = [0, 3], sizes = [16, 1], strides = [1, 1]} : vector<16x8xf32> to vector<16x1xf32>
    %99 = vector.broadcast %98 : vector<16x1xf32> to vector<16x128xf32>
    %100 = arith.addf %97, %99 : vector<16x128xf32>
    %cst_11 = arith.constant 0.000000e+00 : f32
    %101 = vector.broadcast %cst_11 : f32 to vector<16x128xf32>
    %102 = arith.maximumf %100, %101 : vector<16x128xf32>
    %103 = vector.extract_strided_slice %83 {offsets = [0, 4], sizes = [16, 1], strides = [1, 1]} : vector<16x8xf32> to vector<16x1xf32>
    %104 = vector.broadcast %103 : vector<16x1xf32> to vector<16x128xf32>
    %105 = arith.mulf %102, %104 : vector<16x128xf32>
    %106 = arith.addf %82, %105 : vector<16x128xf32>
    %c64 = arith.constant 64 : index
    %c0_12 = arith.constant 0 : index
    %107 = vector.load %arg2[%c64, %c0_12] : memref<256x8xf32, #tpu.memory_space<vmem>>, vector<16x8xf32>
    %108 = vector.extract_strided_slice %107 {offsets = [0, 0], sizes = [16, 1], strides = [1, 1]} : vector<16x8xf32> to vector<16x1xf32>
    %109 = vector.broadcast %108 : vector<16x1xf32> to vector<16x128xf32>
    %110 = vector.broadcast %7 : vector<1x128xf32> to vector<16x128xf32>
    %111 = arith.mulf %109, %110 : vector<16x128xf32>
    %112 = vector.extract_strided_slice %107 {offsets = [0, 1], sizes = [16, 1], strides = [1, 1]} : vector<16x8xf32> to vector<16x1xf32>
    %113 = vector.broadcast %112 : vector<16x1xf32> to vector<16x128xf32>
    %114 = vector.broadcast %8 : vector<1x128xf32> to vector<16x128xf32>
    %115 = arith.mulf %113, %114 : vector<16x128xf32>
    %116 = arith.addf %111, %115 : vector<16x128xf32>
    %117 = vector.extract_strided_slice %107 {offsets = [0, 2], sizes = [16, 1], strides = [1, 1]} : vector<16x8xf32> to vector<16x1xf32>
    %118 = vector.broadcast %117 : vector<16x1xf32> to vector<16x128xf32>
    %119 = vector.broadcast %9 : vector<1x128xf32> to vector<16x128xf32>
    %120 = arith.mulf %118, %119 : vector<16x128xf32>
    %121 = arith.addf %116, %120 : vector<16x128xf32>
    %122 = vector.extract_strided_slice %107 {offsets = [0, 3], sizes = [16, 1], strides = [1, 1]} : vector<16x8xf32> to vector<16x1xf32>
    %123 = vector.broadcast %122 : vector<16x1xf32> to vector<16x128xf32>
    %124 = arith.addf %121, %123 : vector<16x128xf32>
    %cst_13 = arith.constant 0.000000e+00 : f32
    %125 = vector.broadcast %cst_13 : f32 to vector<16x128xf32>
    %126 = arith.maximumf %124, %125 : vector<16x128xf32>
    %127 = vector.extract_strided_slice %107 {offsets = [0, 4], sizes = [16, 1], strides = [1, 1]} : vector<16x8xf32> to vector<16x1xf32>
    %128 = vector.broadcast %127 : vector<16x1xf32> to vector<16x128xf32>
    %129 = arith.mulf %126, %128 : vector<16x128xf32>
    %130 = arith.addf %106, %129 : vector<16x128xf32>
    %c80 = arith.constant 80 : index
    %c0_14 = arith.constant 0 : index
    %131 = vector.load %arg2[%c80, %c0_14] : memref<256x8xf32, #tpu.memory_space<vmem>>, vector<16x8xf32>
    %132 = vector.extract_strided_slice %131 {offsets = [0, 0], sizes = [16, 1], strides = [1, 1]} : vector<16x8xf32> to vector<16x1xf32>
    %133 = vector.broadcast %132 : vector<16x1xf32> to vector<16x128xf32>
    %134 = vector.broadcast %7 : vector<1x128xf32> to vector<16x128xf32>
    %135 = arith.mulf %133, %134 : vector<16x128xf32>
    %136 = vector.extract_strided_slice %131 {offsets = [0, 1], sizes = [16, 1], strides = [1, 1]} : vector<16x8xf32> to vector<16x1xf32>
    %137 = vector.broadcast %136 : vector<16x1xf32> to vector<16x128xf32>
    %138 = vector.broadcast %8 : vector<1x128xf32> to vector<16x128xf32>
    %139 = arith.mulf %137, %138 : vector<16x128xf32>
    %140 = arith.addf %135, %139 : vector<16x128xf32>
    %141 = vector.extract_strided_slice %131 {offsets = [0, 2], sizes = [16, 1], strides = [1, 1]} : vector<16x8xf32> to vector<16x1xf32>
    %142 = vector.broadcast %141 : vector<16x1xf32> to vector<16x128xf32>
    %143 = vector.broadcast %9 : vector<1x128xf32> to vector<16x128xf32>
    %144 = arith.mulf %142, %143 : vector<16x128xf32>
    %145 = arith.addf %140, %144 : vector<16x128xf32>
    %146 = vector.extract_strided_slice %131 {offsets = [0, 3], sizes = [16, 1], strides = [1, 1]} : vector<16x8xf32> to vector<16x1xf32>
    %147 = vector.broadcast %146 : vector<16x1xf32> to vector<16x128xf32>
    %148 = arith.addf %145, %147 : vector<16x128xf32>
    %cst_15 = arith.constant 0.000000e+00 : f32
    %149 = vector.broadcast %cst_15 : f32 to vector<16x128xf32>
    %150 = arith.maximumf %148, %149 : vector<16x128xf32>
    %151 = vector.extract_strided_slice %131 {offsets = [0, 4], sizes = [16, 1], strides = [1, 1]} : vector<16x8xf32> to vector<16x1xf32>
    %152 = vector.broadcast %151 : vector<16x1xf32> to vector<16x128xf32>
    %153 = arith.mulf %150, %152 : vector<16x128xf32>
    %154 = arith.addf %130, %153 : vector<16x128xf32>
    %c96 = arith.constant 96 : index
    %c0_16 = arith.constant 0 : index
    %155 = vector.load %arg2[%c96, %c0_16] : memref<256x8xf32, #tpu.memory_space<vmem>>, vector<16x8xf32>
    %156 = vector.extract_strided_slice %155 {offsets = [0, 0], sizes = [16, 1], strides = [1, 1]} : vector<16x8xf32> to vector<16x1xf32>
    %157 = vector.broadcast %156 : vector<16x1xf32> to vector<16x128xf32>
    %158 = vector.broadcast %7 : vector<1x128xf32> to vector<16x128xf32>
    %159 = arith.mulf %157, %158 : vector<16x128xf32>
    %160 = vector.extract_strided_slice %155 {offsets = [0, 1], sizes = [16, 1], strides = [1, 1]} : vector<16x8xf32> to vector<16x1xf32>
    %161 = vector.broadcast %160 : vector<16x1xf32> to vector<16x128xf32>
    %162 = vector.broadcast %8 : vector<1x128xf32> to vector<16x128xf32>
    %163 = arith.mulf %161, %162 : vector<16x128xf32>
    %164 = arith.addf %159, %163 : vector<16x128xf32>
    %165 = vector.extract_strided_slice %155 {offsets = [0, 2], sizes = [16, 1], strides = [1, 1]} : vector<16x8xf32> to vector<16x1xf32>
    %166 = vector.broadcast %165 : vector<16x1xf32> to vector<16x128xf32>
    %167 = vector.broadcast %9 : vector<1x128xf32> to vector<16x128xf32>
    %168 = arith.mulf %166, %167 : vector<16x128xf32>
    %169 = arith.addf %164, %168 : vector<16x128xf32>
    %170 = vector.extract_strided_slice %155 {offsets = [0, 3], sizes = [16, 1], strides = [1, 1]} : vector<16x8xf32> to vector<16x1xf32>
    %171 = vector.broadcast %170 : vector<16x1xf32> to vector<16x128xf32>
    %172 = arith.addf %169, %171 : vector<16x128xf32>
    %cst_17 = arith.constant 0.000000e+00 : f32
    %173 = vector.broadcast %cst_17 : f32 to vector<16x128xf32>
    %174 = arith.maximumf %172, %173 : vector<16x128xf32>
    %175 = vector.extract_strided_slice %155 {offsets = [0, 4], sizes = [16, 1], strides = [1, 1]} : vector<16x8xf32> to vector<16x1xf32>
    %176 = vector.broadcast %175 : vector<16x1xf32> to vector<16x128xf32>
    %177 = arith.mulf %174, %176 : vector<16x128xf32>
    %178 = arith.addf %154, %177 : vector<16x128xf32>
    %c112 = arith.constant 112 : index
    %c0_18 = arith.constant 0 : index
    %179 = vector.load %arg2[%c112, %c0_18] : memref<256x8xf32, #tpu.memory_space<vmem>>, vector<16x8xf32>
    %180 = vector.extract_strided_slice %179 {offsets = [0, 0], sizes = [16, 1], strides = [1, 1]} : vector<16x8xf32> to vector<16x1xf32>
    %181 = vector.broadcast %180 : vector<16x1xf32> to vector<16x128xf32>
    %182 = vector.broadcast %7 : vector<1x128xf32> to vector<16x128xf32>
    %183 = arith.mulf %181, %182 : vector<16x128xf32>
    %184 = vector.extract_strided_slice %179 {offsets = [0, 1], sizes = [16, 1], strides = [1, 1]} : vector<16x8xf32> to vector<16x1xf32>
    %185 = vector.broadcast %184 : vector<16x1xf32> to vector<16x128xf32>
    %186 = vector.broadcast %8 : vector<1x128xf32> to vector<16x128xf32>
    %187 = arith.mulf %185, %186 : vector<16x128xf32>
    %188 = arith.addf %183, %187 : vector<16x128xf32>
    %189 = vector.extract_strided_slice %179 {offsets = [0, 2], sizes = [16, 1], strides = [1, 1]} : vector<16x8xf32> to vector<16x1xf32>
    %190 = vector.broadcast %189 : vector<16x1xf32> to vector<16x128xf32>
    %191 = vector.broadcast %9 : vector<1x128xf32> to vector<16x128xf32>
    %192 = arith.mulf %190, %191 : vector<16x128xf32>
    %193 = arith.addf %188, %192 : vector<16x128xf32>
    %194 = vector.extract_strided_slice %179 {offsets = [0, 3], sizes = [16, 1], strides = [1, 1]} : vector<16x8xf32> to vector<16x1xf32>
    %195 = vector.broadcast %194 : vector<16x1xf32> to vector<16x128xf32>
    %196 = arith.addf %193, %195 : vector<16x128xf32>
    %cst_19 = arith.constant 0.000000e+00 : f32
    %197 = vector.broadcast %cst_19 : f32 to vector<16x128xf32>
    %198 = arith.maximumf %196, %197 : vector<16x128xf32>
    %199 = vector.extract_strided_slice %179 {offsets = [0, 4], sizes = [16, 1], strides = [1, 1]} : vector<16x8xf32> to vector<16x1xf32>
    %200 = vector.broadcast %199 : vector<16x1xf32> to vector<16x128xf32>
    %201 = arith.mulf %198, %200 : vector<16x128xf32>
    %202 = arith.addf %178, %201 : vector<16x128xf32>
    %c128 = arith.constant 128 : index
    %c0_20 = arith.constant 0 : index
    %203 = vector.load %arg2[%c128, %c0_20] : memref<256x8xf32, #tpu.memory_space<vmem>>, vector<16x8xf32>
    %204 = vector.extract_strided_slice %203 {offsets = [0, 0], sizes = [16, 1], strides = [1, 1]} : vector<16x8xf32> to vector<16x1xf32>
    %205 = vector.broadcast %204 : vector<16x1xf32> to vector<16x128xf32>
    %206 = vector.broadcast %7 : vector<1x128xf32> to vector<16x128xf32>
    %207 = arith.mulf %205, %206 : vector<16x128xf32>
    %208 = vector.extract_strided_slice %203 {offsets = [0, 1], sizes = [16, 1], strides = [1, 1]} : vector<16x8xf32> to vector<16x1xf32>
    %209 = vector.broadcast %208 : vector<16x1xf32> to vector<16x128xf32>
    %210 = vector.broadcast %8 : vector<1x128xf32> to vector<16x128xf32>
    %211 = arith.mulf %209, %210 : vector<16x128xf32>
    %212 = arith.addf %207, %211 : vector<16x128xf32>
    %213 = vector.extract_strided_slice %203 {offsets = [0, 2], sizes = [16, 1], strides = [1, 1]} : vector<16x8xf32> to vector<16x1xf32>
    %214 = vector.broadcast %213 : vector<16x1xf32> to vector<16x128xf32>
    %215 = vector.broadcast %9 : vector<1x128xf32> to vector<16x128xf32>
    %216 = arith.mulf %214, %215 : vector<16x128xf32>
    %217 = arith.addf %212, %216 : vector<16x128xf32>
    %218 = vector.extract_strided_slice %203 {offsets = [0, 3], sizes = [16, 1], strides = [1, 1]} : vector<16x8xf32> to vector<16x1xf32>
    %219 = vector.broadcast %218 : vector<16x1xf32> to vector<16x128xf32>
    %220 = arith.addf %217, %219 : vector<16x128xf32>
    %cst_21 = arith.constant 0.000000e+00 : f32
    %221 = vector.broadcast %cst_21 : f32 to vector<16x128xf32>
    %222 = arith.maximumf %220, %221 : vector<16x128xf32>
    %223 = vector.extract_strided_slice %203 {offsets = [0, 4], sizes = [16, 1], strides = [1, 1]} : vector<16x8xf32> to vector<16x1xf32>
    %224 = vector.broadcast %223 : vector<16x1xf32> to vector<16x128xf32>
    %225 = arith.mulf %222, %224 : vector<16x128xf32>
    %226 = arith.addf %202, %225 : vector<16x128xf32>
    %c144 = arith.constant 144 : index
    %c0_22 = arith.constant 0 : index
    %227 = vector.load %arg2[%c144, %c0_22] : memref<256x8xf32, #tpu.memory_space<vmem>>, vector<16x8xf32>
    %228 = vector.extract_strided_slice %227 {offsets = [0, 0], sizes = [16, 1], strides = [1, 1]} : vector<16x8xf32> to vector<16x1xf32>
    %229 = vector.broadcast %228 : vector<16x1xf32> to vector<16x128xf32>
    %230 = vector.broadcast %7 : vector<1x128xf32> to vector<16x128xf32>
    %231 = arith.mulf %229, %230 : vector<16x128xf32>
    %232 = vector.extract_strided_slice %227 {offsets = [0, 1], sizes = [16, 1], strides = [1, 1]} : vector<16x8xf32> to vector<16x1xf32>
    %233 = vector.broadcast %232 : vector<16x1xf32> to vector<16x128xf32>
    %234 = vector.broadcast %8 : vector<1x128xf32> to vector<16x128xf32>
    %235 = arith.mulf %233, %234 : vector<16x128xf32>
    %236 = arith.addf %231, %235 : vector<16x128xf32>
    %237 = vector.extract_strided_slice %227 {offsets = [0, 2], sizes = [16, 1], strides = [1, 1]} : vector<16x8xf32> to vector<16x1xf32>
    %238 = vector.broadcast %237 : vector<16x1xf32> to vector<16x128xf32>
    %239 = vector.broadcast %9 : vector<1x128xf32> to vector<16x128xf32>
    %240 = arith.mulf %238, %239 : vector<16x128xf32>
    %241 = arith.addf %236, %240 : vector<16x128xf32>
    %242 = vector.extract_strided_slice %227 {offsets = [0, 3], sizes = [16, 1], strides = [1, 1]} : vector<16x8xf32> to vector<16x1xf32>
    %243 = vector.broadcast %242 : vector<16x1xf32> to vector<16x128xf32>
    %244 = arith.addf %241, %243 : vector<16x128xf32>
    %cst_23 = arith.constant 0.000000e+00 : f32
    %245 = vector.broadcast %cst_23 : f32 to vector<16x128xf32>
    %246 = arith.maximumf %244, %245 : vector<16x128xf32>
    %247 = vector.extract_strided_slice %227 {offsets = [0, 4], sizes = [16, 1], strides = [1, 1]} : vector<16x8xf32> to vector<16x1xf32>
    %248 = vector.broadcast %247 : vector<16x1xf32> to vector<16x128xf32>
    %249 = arith.mulf %246, %248 : vector<16x128xf32>
    %250 = arith.addf %226, %249 : vector<16x128xf32>
    %c160 = arith.constant 160 : index
    %c0_24 = arith.constant 0 : index
    %251 = vector.load %arg2[%c160, %c0_24] : memref<256x8xf32, #tpu.memory_space<vmem>>, vector<16x8xf32>
    %252 = vector.extract_strided_slice %251 {offsets = [0, 0], sizes = [16, 1], strides = [1, 1]} : vector<16x8xf32> to vector<16x1xf32>
    %253 = vector.broadcast %252 : vector<16x1xf32> to vector<16x128xf32>
    %254 = vector.broadcast %7 : vector<1x128xf32> to vector<16x128xf32>
    %255 = arith.mulf %253, %254 : vector<16x128xf32>
    %256 = vector.extract_strided_slice %251 {offsets = [0, 1], sizes = [16, 1], strides = [1, 1]} : vector<16x8xf32> to vector<16x1xf32>
    %257 = vector.broadcast %256 : vector<16x1xf32> to vector<16x128xf32>
    %258 = vector.broadcast %8 : vector<1x128xf32> to vector<16x128xf32>
    %259 = arith.mulf %257, %258 : vector<16x128xf32>
    %260 = arith.addf %255, %259 : vector<16x128xf32>
    %261 = vector.extract_strided_slice %251 {offsets = [0, 2], sizes = [16, 1], strides = [1, 1]} : vector<16x8xf32> to vector<16x1xf32>
    %262 = vector.broadcast %261 : vector<16x1xf32> to vector<16x128xf32>
    %263 = vector.broadcast %9 : vector<1x128xf32> to vector<16x128xf32>
    %264 = arith.mulf %262, %263 : vector<16x128xf32>
    %265 = arith.addf %260, %264 : vector<16x128xf32>
    %266 = vector.extract_strided_slice %251 {offsets = [0, 3], sizes = [16, 1], strides = [1, 1]} : vector<16x8xf32> to vector<16x1xf32>
    %267 = vector.broadcast %266 : vector<16x1xf32> to vector<16x128xf32>
    %268 = arith.addf %265, %267 : vector<16x128xf32>
    %cst_25 = arith.constant 0.000000e+00 : f32
    %269 = vector.broadcast %cst_25 : f32 to vector<16x128xf32>
    %270 = arith.maximumf %268, %269 : vector<16x128xf32>
    %271 = vector.extract_strided_slice %251 {offsets = [0, 4], sizes = [16, 1], strides = [1, 1]} : vector<16x8xf32> to vector<16x1xf32>
    %272 = vector.broadcast %271 : vector<16x1xf32> to vector<16x128xf32>
    %273 = arith.mulf %270, %272 : vector<16x128xf32>
    %274 = arith.addf %250, %273 : vector<16x128xf32>
    %c176 = arith.constant 176 : index
    %c0_26 = arith.constant 0 : index
    %275 = vector.load %arg2[%c176, %c0_26] : memref<256x8xf32, #tpu.memory_space<vmem>>, vector<16x8xf32>
    %276 = vector.extract_strided_slice %275 {offsets = [0, 0], sizes = [16, 1], strides = [1, 1]} : vector<16x8xf32> to vector<16x1xf32>
    %277 = vector.broadcast %276 : vector<16x1xf32> to vector<16x128xf32>
    %278 = vector.broadcast %7 : vector<1x128xf32> to vector<16x128xf32>
    %279 = arith.mulf %277, %278 : vector<16x128xf32>
    %280 = vector.extract_strided_slice %275 {offsets = [0, 1], sizes = [16, 1], strides = [1, 1]} : vector<16x8xf32> to vector<16x1xf32>
    %281 = vector.broadcast %280 : vector<16x1xf32> to vector<16x128xf32>
    %282 = vector.broadcast %8 : vector<1x128xf32> to vector<16x128xf32>
    %283 = arith.mulf %281, %282 : vector<16x128xf32>
    %284 = arith.addf %279, %283 : vector<16x128xf32>
    %285 = vector.extract_strided_slice %275 {offsets = [0, 2], sizes = [16, 1], strides = [1, 1]} : vector<16x8xf32> to vector<16x1xf32>
    %286 = vector.broadcast %285 : vector<16x1xf32> to vector<16x128xf32>
    %287 = vector.broadcast %9 : vector<1x128xf32> to vector<16x128xf32>
    %288 = arith.mulf %286, %287 : vector<16x128xf32>
    %289 = arith.addf %284, %288 : vector<16x128xf32>
    %290 = vector.extract_strided_slice %275 {offsets = [0, 3], sizes = [16, 1], strides = [1, 1]} : vector<16x8xf32> to vector<16x1xf32>
    %291 = vector.broadcast %290 : vector<16x1xf32> to vector<16x128xf32>
    %292 = arith.addf %289, %291 : vector<16x128xf32>
    %cst_27 = arith.constant 0.000000e+00 : f32
    %293 = vector.broadcast %cst_27 : f32 to vector<16x128xf32>
    %294 = arith.maximumf %292, %293 : vector<16x128xf32>
    %295 = vector.extract_strided_slice %275 {offsets = [0, 4], sizes = [16, 1], strides = [1, 1]} : vector<16x8xf32> to vector<16x1xf32>
    %296 = vector.broadcast %295 : vector<16x1xf32> to vector<16x128xf32>
    %297 = arith.mulf %294, %296 : vector<16x128xf32>
    %298 = arith.addf %274, %297 : vector<16x128xf32>
    %c192 = arith.constant 192 : index
    %c0_28 = arith.constant 0 : index
    %299 = vector.load %arg2[%c192, %c0_28] : memref<256x8xf32, #tpu.memory_space<vmem>>, vector<16x8xf32>
    %300 = vector.extract_strided_slice %299 {offsets = [0, 0], sizes = [16, 1], strides = [1, 1]} : vector<16x8xf32> to vector<16x1xf32>
    %301 = vector.broadcast %300 : vector<16x1xf32> to vector<16x128xf32>
    %302 = vector.broadcast %7 : vector<1x128xf32> to vector<16x128xf32>
    %303 = arith.mulf %301, %302 : vector<16x128xf32>
    %304 = vector.extract_strided_slice %299 {offsets = [0, 1], sizes = [16, 1], strides = [1, 1]} : vector<16x8xf32> to vector<16x1xf32>
    %305 = vector.broadcast %304 : vector<16x1xf32> to vector<16x128xf32>
    %306 = vector.broadcast %8 : vector<1x128xf32> to vector<16x128xf32>
    %307 = arith.mulf %305, %306 : vector<16x128xf32>
    %308 = arith.addf %303, %307 : vector<16x128xf32>
    %309 = vector.extract_strided_slice %299 {offsets = [0, 2], sizes = [16, 1], strides = [1, 1]} : vector<16x8xf32> to vector<16x1xf32>
    %310 = vector.broadcast %309 : vector<16x1xf32> to vector<16x128xf32>
    %311 = vector.broadcast %9 : vector<1x128xf32> to vector<16x128xf32>
    %312 = arith.mulf %310, %311 : vector<16x128xf32>
    %313 = arith.addf %308, %312 : vector<16x128xf32>
    %314 = vector.extract_strided_slice %299 {offsets = [0, 3], sizes = [16, 1], strides = [1, 1]} : vector<16x8xf32> to vector<16x1xf32>
    %315 = vector.broadcast %314 : vector<16x1xf32> to vector<16x128xf32>
    %316 = arith.addf %313, %315 : vector<16x128xf32>
    %cst_29 = arith.constant 0.000000e+00 : f32
    %317 = vector.broadcast %cst_29 : f32 to vector<16x128xf32>
    %318 = arith.maximumf %316, %317 : vector<16x128xf32>
    %319 = vector.extract_strided_slice %299 {offsets = [0, 4], sizes = [16, 1], strides = [1, 1]} : vector<16x8xf32> to vector<16x1xf32>
    %320 = vector.broadcast %319 : vector<16x1xf32> to vector<16x128xf32>
    %321 = arith.mulf %318, %320 : vector<16x128xf32>
    %322 = arith.addf %298, %321 : vector<16x128xf32>
    %c208 = arith.constant 208 : index
    %c0_30 = arith.constant 0 : index
    %323 = vector.load %arg2[%c208, %c0_30] : memref<256x8xf32, #tpu.memory_space<vmem>>, vector<16x8xf32>
    %324 = vector.extract_strided_slice %323 {offsets = [0, 0], sizes = [16, 1], strides = [1, 1]} : vector<16x8xf32> to vector<16x1xf32>
    %325 = vector.broadcast %324 : vector<16x1xf32> to vector<16x128xf32>
    %326 = vector.broadcast %7 : vector<1x128xf32> to vector<16x128xf32>
    %327 = arith.mulf %325, %326 : vector<16x128xf32>
    %328 = vector.extract_strided_slice %323 {offsets = [0, 1], sizes = [16, 1], strides = [1, 1]} : vector<16x8xf32> to vector<16x1xf32>
    %329 = vector.broadcast %328 : vector<16x1xf32> to vector<16x128xf32>
    %330 = vector.broadcast %8 : vector<1x128xf32> to vector<16x128xf32>
    %331 = arith.mulf %329, %330 : vector<16x128xf32>
    %332 = arith.addf %327, %331 : vector<16x128xf32>
    %333 = vector.extract_strided_slice %323 {offsets = [0, 2], sizes = [16, 1], strides = [1, 1]} : vector<16x8xf32> to vector<16x1xf32>
    %334 = vector.broadcast %333 : vector<16x1xf32> to vector<16x128xf32>
    %335 = vector.broadcast %9 : vector<1x128xf32> to vector<16x128xf32>
    %336 = arith.mulf %334, %335 : vector<16x128xf32>
    %337 = arith.addf %332, %336 : vector<16x128xf32>
    %338 = vector.extract_strided_slice %323 {offsets = [0, 3], sizes = [16, 1], strides = [1, 1]} : vector<16x8xf32> to vector<16x1xf32>
    %339 = vector.broadcast %338 : vector<16x1xf32> to vector<16x128xf32>
    %340 = arith.addf %337, %339 : vector<16x128xf32>
    %cst_31 = arith.constant 0.000000e+00 : f32
    %341 = vector.broadcast %cst_31 : f32 to vector<16x128xf32>
    %342 = arith.maximumf %340, %341 : vector<16x128xf32>
    %343 = vector.extract_strided_slice %323 {offsets = [0, 4], sizes = [16, 1], strides = [1, 1]} : vector<16x8xf32> to vector<16x1xf32>
    %344 = vector.broadcast %343 : vector<16x1xf32> to vector<16x128xf32>
    %345 = arith.mulf %342, %344 : vector<16x128xf32>
    %346 = arith.addf %322, %345 : vector<16x128xf32>
    %c224 = arith.constant 224 : index
    %c0_32 = arith.constant 0 : index
    %347 = vector.load %arg2[%c224, %c0_32] : memref<256x8xf32, #tpu.memory_space<vmem>>, vector<16x8xf32>
    %348 = vector.extract_strided_slice %347 {offsets = [0, 0], sizes = [16, 1], strides = [1, 1]} : vector<16x8xf32> to vector<16x1xf32>
    %349 = vector.broadcast %348 : vector<16x1xf32> to vector<16x128xf32>
    %350 = vector.broadcast %7 : vector<1x128xf32> to vector<16x128xf32>
    %351 = arith.mulf %349, %350 : vector<16x128xf32>
    %352 = vector.extract_strided_slice %347 {offsets = [0, 1], sizes = [16, 1], strides = [1, 1]} : vector<16x8xf32> to vector<16x1xf32>
    %353 = vector.broadcast %352 : vector<16x1xf32> to vector<16x128xf32>
    %354 = vector.broadcast %8 : vector<1x128xf32> to vector<16x128xf32>
    %355 = arith.mulf %353, %354 : vector<16x128xf32>
    %356 = arith.addf %351, %355 : vector<16x128xf32>
    %357 = vector.extract_strided_slice %347 {offsets = [0, 2], sizes = [16, 1], strides = [1, 1]} : vector<16x8xf32> to vector<16x1xf32>
    %358 = vector.broadcast %357 : vector<16x1xf32> to vector<16x128xf32>
    %359 = vector.broadcast %9 : vector<1x128xf32> to vector<16x128xf32>
    %360 = arith.mulf %358, %359 : vector<16x128xf32>
    %361 = arith.addf %356, %360 : vector<16x128xf32>
    %362 = vector.extract_strided_slice %347 {offsets = [0, 3], sizes = [16, 1], strides = [1, 1]} : vector<16x8xf32> to vector<16x1xf32>
    %363 = vector.broadcast %362 : vector<16x1xf32> to vector<16x128xf32>
    %364 = arith.addf %361, %363 : vector<16x128xf32>
    %cst_33 = arith.constant 0.000000e+00 : f32
    %365 = vector.broadcast %cst_33 : f32 to vector<16x128xf32>
    %366 = arith.maximumf %364, %365 : vector<16x128xf32>
    %367 = vector.extract_strided_slice %347 {offsets = [0, 4], sizes = [16, 1], strides = [1, 1]} : vector<16x8xf32> to vector<16x1xf32>
    %368 = vector.broadcast %367 : vector<16x1xf32> to vector<16x128xf32>
    %369 = arith.mulf %366, %368 : vector<16x128xf32>
    %370 = arith.addf %346, %369 : vector<16x128xf32>
    %c240 = arith.constant 240 : index
    %c0_34 = arith.constant 0 : index
    %371 = vector.load %arg2[%c240, %c0_34] : memref<256x8xf32, #tpu.memory_space<vmem>>, vector<16x8xf32>
    %372 = vector.extract_strided_slice %371 {offsets = [0, 0], sizes = [16, 1], strides = [1, 1]} : vector<16x8xf32> to vector<16x1xf32>
    %373 = vector.broadcast %372 : vector<16x1xf32> to vector<16x128xf32>
    %374 = vector.broadcast %7 : vector<1x128xf32> to vector<16x128xf32>
    %375 = arith.mulf %373, %374 : vector<16x128xf32>
    %376 = vector.extract_strided_slice %371 {offsets = [0, 1], sizes = [16, 1], strides = [1, 1]} : vector<16x8xf32> to vector<16x1xf32>
    %377 = vector.broadcast %376 : vector<16x1xf32> to vector<16x128xf32>
    %378 = vector.broadcast %8 : vector<1x128xf32> to vector<16x128xf32>
    %379 = arith.mulf %377, %378 : vector<16x128xf32>
    %380 = arith.addf %375, %379 : vector<16x128xf32>
    %381 = vector.extract_strided_slice %371 {offsets = [0, 2], sizes = [16, 1], strides = [1, 1]} : vector<16x8xf32> to vector<16x1xf32>
    %382 = vector.broadcast %381 : vector<16x1xf32> to vector<16x128xf32>
    %383 = vector.broadcast %9 : vector<1x128xf32> to vector<16x128xf32>
    %384 = arith.mulf %382, %383 : vector<16x128xf32>
    %385 = arith.addf %380, %384 : vector<16x128xf32>
    %386 = vector.extract_strided_slice %371 {offsets = [0, 3], sizes = [16, 1], strides = [1, 1]} : vector<16x8xf32> to vector<16x1xf32>
    %387 = vector.broadcast %386 : vector<16x1xf32> to vector<16x128xf32>
    %388 = arith.addf %385, %387 : vector<16x128xf32>
    %cst_35 = arith.constant 0.000000e+00 : f32
    %389 = vector.broadcast %cst_35 : f32 to vector<16x128xf32>
    %390 = arith.maximumf %388, %389 : vector<16x128xf32>
    %391 = vector.extract_strided_slice %371 {offsets = [0, 4], sizes = [16, 1], strides = [1, 1]} : vector<16x8xf32> to vector<16x1xf32>
    %392 = vector.broadcast %391 : vector<16x1xf32> to vector<16x128xf32>
    %393 = arith.mulf %390, %392 : vector<16x128xf32>
    %394 = arith.addf %370, %393 : vector<16x128xf32>
    %cst_36 = arith.constant dense<0.000000e+00> : vector<128xf32>
    %395 = vector.multi_reduction <add>, %394, %cst_36 [0] : vector<16x128xf32> to vector<128xf32>
    %396 = vector.shape_cast %395 : vector<128xf32> to vector<1x128xf32>
    %397 = vector.broadcast %0 : f32 to vector<1x128xf32>
    %398 = arith.addf %396, %397 : vector<1x128xf32>
    %399 = math.tanh %398 : vector<1x128xf32>
    %cst_37 = arith.constant 2.000000e+00 : f32
    %400 = vector.broadcast %cst_37 : f32 to vector<1x128xf32>
    %401 = arith.mulf %400, %399 : vector<1x128xf32>
    %c0_38 = arith.constant 0 : index
    %402 = arith.index_cast %4 : i32 to index
    %403 = vector.load %arg4[%c0_38, %402] : memref<1x128xf32, #tpu.memory_space<vmem>>, vector<1x128xf32>
    tpu.vector_store %arg4[%c0_38, %402], %401 {strides = array<i32>} : memref<1x128xf32, #tpu.memory_space<vmem>>, vector<1x128xf32>,
    %c1_i32_39 = arith.constant 1 : i32
    return
  }
  func.func @transform_0(%arg0: i32) -> (i32, i32) {
    %c0_i32 = arith.constant 0 : i32
    %c0_i32_0 = arith.constant 0 : i32
    return %c0_i32, %arg0 : i32, i32
  }
  func.func @transform_1(%arg0: i32) -> (i32, i32) {
    %c0_i32 = arith.constant 0 : i32
    %c0_i32_0 = arith.constant 0 : i32
    %c0_i32_1 = arith.constant 0 : i32
    return %c0_i32, %c0_i32_0 : i32, i32
  }
  func.func @transform_2(%arg0: i32) -> (i32, i32) {
    %c0_i32 = arith.constant 0 : i32
    %c0_i32_0 = arith.constant 0 : i32
    %c0_i32_1 = arith.constant 0 : i32
    return %c0_i32, %c0_i32_0 : i32, i32
  }
  func.func @transform_3(%arg0: i32) -> (i32, i32) {
    %c0_i32 = arith.constant 0 : i32
    %c0_i32_0 = arith.constant 0 : i32
    return %c0_i32, %arg0 : i32, i32
  }
}

</mosaic_0001>

<llo_original>
// kernel: actor_forward.1
$region0: #{actor_forward.1}
  #allocation0 [shape = 'u32[]', space=smem, size = 0x4, offset = 0x4, fixed_abs, tag = 'smem constant byte address 0x4 - core index']
  #allocation1 [shape = 'u32[144,128]{1,0:T(1,128)}', space=vmem, size = 0x12000, scoped, tag = 'internal scratch']
  #allocation2 [shape = 'f32[1,1]{1,0:T(1,128)S(6)}', space=smem, size = 0x200, scoped, tag = 'scoped memory for actor_forward.1']
  %s0 = inlined_call_operand.vmem [shape: f32[3,128], index: 0, kind: input, shape index: {}]
  %s1 = inlined_call_operand.vmem [shape: f32[256,8], index: 1, kind: input, shape index: {}]
  %s2 = inlined_call_operand.<no memory space> [shape: f32[1,1], index: 2, kind: input, shape index: {}]
  %s3 = inlined_call_operand.vmem [shape: f32[1,128], index: 3, kind: output, shape index: {}]
  %s4 = sld [smem:[#allocation0]]
  $region22: #{actor_forward.1} parent=0
    _
  %s6 = ssub.s32 1, %s4
  %s7 = scalar_select 0, %s6, %s4
  %8 = sst [smem:[#allocation2]] %s2
  // Predicated region
  $region2: #{actor_forward.1} parent=0 // pred_check
    _
  $region3: #{actor_forward.1} parent=0 // pred_check_branch
    %10 = sbr.rel (0) target = $region5
  $region4: #{actor_forward.1} parent=0 // pred_region
    _
  $region5: #{actor_forward.1} parent=0 // pred_fallthru
    _
  // Predicated region
  $region6: #{actor_forward.1} parent=0 // pred_check
    _
  $region7: #{actor_forward.1} parent=0 // pred_check_branch
    %12 = sbr.rel (0) target = $region9
  $region8: #{actor_forward.1} parent=0 // pred_region
    _
  $region9: #{actor_forward.1} parent=0 // pred_fallthru
    _
  // Predicated region
  $region10: #{actor_forward.1} parent=0 // pred_check
    _
  $region11: #{actor_forward.1} parent=0 // pred_check_branch
    %14 = sbr.rel (0) target = $region13
  $region12: #{actor_forward.1} parent=0 // pred_region
    _
  $region13: #{actor_forward.1} parent=0 // pred_fallthru
    _
  %s15 = sld [smem:[#allocation2]]
  %v16 = vld [vmem:[%s0] sm:$0x7]
  %v17 = vld [vmem:[%s1] sm:$0xff]
  %v18 = vld [vmem:[%s1 + $0x8] sm:$0xff]
  %20 = vset.pattern.permute.xlu0 0
  %21 = vperm.xlu0 %20, %v17
  %v22 = vpop.permute.xlu0 %21
  %25 = vset.pattern.permute.xlu0 0
  %26 = vperm.xlu0 %25, %v18
  %v27 = vpop.permute.xlu0 %26
  %v29 = vlaneseq
  %v30 = vshrl.u32 %v29, 7
  %v31 = vsub.s32 0, %v30
  %v32 = vrot.slane %v16, %v31
  %v33 = vmul.f32 %v22, %v32
  %v34 = vmul.f32 %v27, %v32
  %35 = vset.pattern.permute.xlu0 1
  %36 = vperm.xlu0 %35, %v17
  %v37 = vpop.permute.xlu0 %36
  %39 = vset.pattern.permute.xlu0 1
  %40 = vperm.xlu0 %39, %v18
  %v41 = vpop.permute.xlu0 %40
  %v43 = vlaneseq
  %v44 = vshrl.u32 %v43, 7
  %v45 = vsub.s32 1, %v44
  %v46 = vrot.slane %v16, %v45
  %v47 = vmul.f32 %v37, %v46
  %v48 = vmul.f32 %v41, %v46
  %v49 = vadd.f32 %v33, %v47
  %v50 = vadd.f32 %v34, %v48
  %51 = vset.pattern.permute.xlu0 2
  %52 = vperm.xlu0 %51, %v17
  %v53 = vpop.permute.xlu0 %52
  %55 = vset.pattern.permute.xlu0 2
  %56 = vperm.xlu0 %55, %v18
  %v57 = vpop.permute.xlu0 %56
  %v59 = vlaneseq
  %v60 = vshrl.u32 %v59, 7
  %v61 = vsub.s32 2, %v60
  %v62 = vrot.slane %v16, %v61
  %v63 = vmul.f32 %v53, %v62
  %v64 = vmul.f32 %v57, %v62
  %v65 = vadd.f32 %v49, %v63
  %v66 = vadd.f32 %v50, %v64
  %67 = vset.pattern.permute.xlu0 3
  %68 = vperm.xlu0 %67, %v17
  %v69 = vpop.permute.xlu0 %68
  %71 = vset.pattern.permute.xlu0 3
  %72 = vperm.xlu0 %71, %v18
  %v73 = vpop.permute.xlu0 %72
  %v75 = vadd.f32 %v65, %v69
  %v76 = vadd.f32 %v66, %v73
  %v77 = vmax.f32 %v75, 0.0
  %v78 = vmax.f32 %v76, 0.0
  %79 = vset.pattern.permute.xlu0 4
  %80 = vperm.xlu0 %79, %v17
  %v81 = vpop.permute.xlu0 %80
  %83 = vset.pattern.permute.xlu0 4
  %84 = vperm.xlu0 %83, %v18
  %v85 = vpop.permute.xlu0 %84
  %v87 = vmul.f32 %v77, %v81
  %v88 = vmul.f32 %v78, %v85
  %v89 = vadd.f32 %v87, 0.0
  %v90 = vadd.f32 %v88, 0.0
  %v91 = vld [vmem:[%s1 + $0x10] sm:$0xff]
  %v92 = vld [vmem:[%s1 + $0x18] sm:$0xff]
  %94 = vset.pattern.permute.xlu0 0
  %95 = vperm.xlu0 %94, %v91
  %v96 = vpop.permute.xlu0 %95
  %99 = vset.pattern.permute.xlu0 0
  %100 = vperm.xlu0 %99, %v92
  %v101 = vpop.permute.xlu0 %100
  %v103 = vmul.f32 %v96, %v32
  %v104 = vmul.f32 %v101, %v32
  %105 = vset.pattern.permute.xlu0 1
  %106 = vperm.xlu0 %105, %v91
  %v107 = vpop.permute.xlu0 %106
  %109 = vset.pattern.permute.xlu0 1
  %110 = vperm.xlu0 %109, %v92
  %v111 = vpop.permute.xlu0 %110
  %v113 = vmul.f32 %v107, %v46
  %v114 = vmul.f32 %v111, %v46
  %v115 = vadd.f32 %v103, %v113
  %v116 = vadd.f32 %v104, %v114
  %117 = vset.pattern.permute.xlu0 2
  %118 = vperm.xlu0 %117, %v91
  %v119 = vpop.permute.xlu0 %118
  %121 = vset.pattern.permute.xlu0 2
  %122 = vperm.xlu0 %121, %v92
  %v123 = vpop.permute.xlu0 %122
  %v125 = vmul.f32 %v119, %v62
  %v126 = vmul.f32 %v123, %v62
  %v127 = vadd.f32 %v115, %v125
  %v128 = vadd.f32 %v116, %v126
  %129 = vset.pattern.permute.xlu0 3
  %130 = vperm.xlu0 %129, %v91
  %v131 = vpop.permute.xlu0 %130
  %133 = vset.pattern.permute.xlu0 3
  %134 = vperm.xlu0 %133, %v92
  %v135 = vpop.permute.xlu0 %134
  %v137 = vadd.f32 %v127, %v131
  %v138 = vadd.f32 %v128, %v135
  %v139 = vmax.f32 %v137, 0.0
  %v140 = vmax.f32 %v138, 0.0
  %141 = vset.pattern.permute.xlu0 4
  %142 = vperm.xlu0 %141, %v91
  %v143 = vpop.permute.xlu0 %142
  %145 = vset.pattern.permute.xlu0 4
  %146 = vperm.xlu0 %145, %v92
  %v147 = vpop.permute.xlu0 %146
  %v149 = vmul.f32 %v139, %v143
  %v150 = vmul.f32 %v140, %v147
  %v151 = vadd.f32 %v89, %v149
  %v152 = vadd.f32 %v90, %v150
  %v153 = vld [vmem:[%s1 + $0x20] sm:$0xff]
  %v154 = vld [vmem:[%s1 + $0x28] sm:$0xff]
  %156 = vset.pattern.permute.xlu0 0
  %157 = vperm.xlu0 %156, %v153
  %v158 = vpop.permute.xlu0 %157
  %161 = vset.pattern.permute.xlu0 0
  %162 = vperm.xlu0 %161, %v154
  %v163 = vpop.permute.xlu0 %162
  %v165 = vmul.f32 %v158, %v32
  %v166 = vmul.f32 %v163, %v32
  %167 = vset.pattern.permute.xlu0 1
  %168 = vperm.xlu0 %167, %v153
  %v169 = vpop.permute.xlu0 %168
  %171 = vset.pattern.permute.xlu0 1
  %172 = vperm.xlu0 %171, %v154
  %v173 = vpop.permute.xlu0 %172
  %v175 = vmul.f32 %v169, %v46
  %v176 = vmul.f32 %v173, %v46
  %v177 = vadd.f32 %v165, %v175
  %v178 = vadd.f32 %v166, %v176
  %179 = vset.pattern.permute.xlu0 2
  %180 = vperm.xlu0 %179, %v153
  %v181 = vpop.permute.xlu0 %180
  %183 = vset.pattern.permute.xlu0 2
  %184 = vperm.xlu0 %183, %v154
  %v185 = vpop.permute.xlu0 %184
  %v187 = vmul.f32 %v181, %v62
  %v188 = vmul.f32 %v185, %v62
  %v189 = vadd.f32 %v177, %v187
  %v190 = vadd.f32 %v178, %v188
  %191 = vset.pattern.permute.xlu0 3
  %192 = vperm.xlu0 %191, %v153
  %v193 = vpop.permute.xlu0 %192
  %195 = vset.pattern.permute.xlu0 3
  %196 = vperm.xlu0 %195, %v154
  %v197 = vpop.permute.xlu0 %196
  %v199 = vadd.f32 %v189, %v193
  %v200 = vadd.f32 %v190, %v197
  %v201 = vmax.f32 %v199, 0.0
  %v202 = vmax.f32 %v200, 0.0
  %203 = vset.pattern.permute.xlu0 4
  %204 = vperm.xlu0 %203, %v153
  %v205 = vpop.permute.xlu0 %204
  %207 = vset.pattern.permute.xlu0 4
  %208 = vperm.xlu0 %207, %v154
  %v209 = vpop.permute.xlu0 %208
  %v211 = vmul.f32 %v201, %v205
  %v212 = vmul.f32 %v202, %v209
  %v213 = vadd.f32 %v151, %v211
  %v214 = vadd.f32 %v152, %v212
  %v215 = vld [vmem:[%s1 + $0x30] sm:$0xff]
  %v216 = vld [vmem:[%s1 + $0x38] sm:$0xff]
  %218 = vset.pattern.permute.xlu0 0
  %219 = vperm.xlu0 %218, %v215
  %v220 = vpop.permute.xlu0 %219
  %223 = vset.pattern.permute.xlu0 0
  %224 = vperm.xlu0 %223, %v216
  %v225 = vpop.permute.xlu0 %224
  %v227 = vmul.f32 %v220, %v32
  %v228 = vmul.f32 %v225, %v32
  %229 = vset.pattern.permute.xlu0 1
  %230 = vperm.xlu0 %229, %v215
  %v231 = vpop.permute.xlu0 %230
  %233 = vset.pattern.permute.xlu0 1
  %234 = vperm.xlu0 %233, %v216
  %v235 = vpop.permute.xlu0 %234
  %v237 = vmul.f32 %v231, %v46
  %v238 = vmul.f32 %v235, %v46
  %v239 = vadd.f32 %v227, %v237
  %v240 = vadd.f32 %v228, %v238
  %241 = vset.pattern.permute.xlu0 2
  %242 = vperm.xlu0 %241, %v215
  %v243 = vpop.permute.xlu0 %242
  %245 = vset.pattern.permute.xlu0 2
  %246 = vperm.xlu0 %245, %v216
  %v247 = vpop.permute.xlu0 %246
  %v249 = vmul.f32 %v243, %v62
  %v250 = vmul.f32 %v247, %v62
  %v251 = vadd.f32 %v239, %v249
  %v252 = vadd.f32 %v240, %v250
  %253 = vset.pattern.permute.xlu0 3
  %254 = vperm.xlu0 %253, %v215
  %v255 = vpop.permute.xlu0 %254
  %257 = vset.pattern.permute.xlu0 3
  %258 = vperm.xlu0 %257, %v216
  %v259 = vpop.permute.xlu0 %258
  %v261 = vadd.f32 %v251, %v255
  %v262 = vadd.f32 %v252, %v259
  %v263 = vmax.f32 %v261, 0.0
  %v264 = vmax.f32 %v262, 0.0
  %265 = vset.pattern.permute.xlu0 4
  %266 = vperm.xlu0 %265, %v215
  %v267 = vpop.permute.xlu0 %266
  %269 = vset.pattern.permute.xlu0 4
  %270 = vperm.xlu0 %269, %v216
  %v271 = vpop.permute.xlu0 %270
  %v273 = vmul.f32 %v263, %v267
  %v274 = vmul.f32 %v264, %v271
  %v275 = vadd.f32 %v213, %v273
  %v276 = vadd.f32 %v214, %v274
  %v277 = vld [vmem:[%s1 + $0x40] sm:$0xff]
  %v278 = vld [vmem:[%s1 + $0x48] sm:$0xff]
  %280 = vset.pattern.permute.xlu0 0
  %281 = vperm.xlu0 %280, %v277
  %v282 = vpop.permute.xlu0 %281
  %285 = vset.pattern.permute.xlu0 0
  %286 = vperm.xlu0 %285, %v278
  %v287 = vpop.permute.xlu0 %286
  %v289 = vmul.f32 %v282, %v32
  %v290 = vmul.f32 %v287, %v32
  %291 = vset.pattern.permute.xlu0 1
  %292 = vperm.xlu0 %291, %v277
  %v293 = vpop.permute.xlu0 %292
  %295 = vset.pattern.permute.xlu0 1
  %296 = vperm.xlu0 %295, %v278
  %v297 = vpop.permute.xlu0 %296
  %v299 = vmul.f32 %v293, %v46
  %v300 = vmul.f32 %v297, %v46
  %v301 = vadd.f32 %v289, %v299
  %v302 = vadd.f32 %v290, %v300
  %303 = vset.pattern.permute.xlu0 2
  %304 = vperm.xlu0 %303, %v277
  %v305 = vpop.permute.xlu0 %304
  %307 = vset.pattern.permute.xlu0 2
  %308 = vperm.xlu0 %307, %v278
  %v309 = vpop.permute.xlu0 %308
  %v311 = vmul.f32 %v305, %v62
  %v312 = vmul.f32 %v309, %v62
  %v313 = vadd.f32 %v301, %v311
  %v314 = vadd.f32 %v302, %v312
  %315 = vset.pattern.permute.xlu0 3
  %316 = vperm.xlu0 %315, %v277
  %v317 = vpop.permute.xlu0 %316
  %319 = vset.pattern.permute.xlu0 3
  %320 = vperm.xlu0 %319, %v278
  %v321 = vpop.permute.xlu0 %320
  %v323 = vadd.f32 %v313, %v317
  %v324 = vadd.f32 %v314, %v321
  %v325 = vmax.f32 %v323, 0.0
  %v326 = vmax.f32 %v324, 0.0
  %327 = vset.pattern.permute.xlu0 4
  %328 = vperm.xlu0 %327, %v277
  %v329 = vpop.permute.xlu0 %328
  %331 = vset.pattern.permute.xlu0 4
  %332 = vperm.xlu0 %331, %v278
  %v333 = vpop.permute.xlu0 %332
  %v335 = vmul.f32 %v325, %v329
  %v336 = vmul.f32 %v326, %v333
  %v337 = vadd.f32 %v275, %v335
  %v338 = vadd.f32 %v276, %v336
  %v339 = vld [vmem:[%s1 + $0x50] sm:$0xff]
  %v340 = vld [vmem:[%s1 + $0x58] sm:$0xff]
  %342 = vset.pattern.permute.xlu0 0
  %343 = vperm.xlu0 %342, %v339
  %v344 = vpop.permute.xlu0 %343
  %347 = vset.pattern.permute.xlu0 0
  %348 = vperm.xlu0 %347, %v340
  %v349 = vpop.permute.xlu0 %348
  %v351 = vmul.f32 %v344, %v32
  %v352 = vmul.f32 %v349, %v32
  %353 = vset.pattern.permute.xlu0 1
  %354 = vperm.xlu0 %353, %v339
  %v355 = vpop.permute.xlu0 %354
  %357 = vset.pattern.permute.xlu0 1
  %358 = vperm.xlu0 %357, %v340
  %v359 = vpop.permute.xlu0 %358
  %v361 = vmul.f32 %v355, %v46
  %v362 = vmul.f32 %v359, %v46
  %v363 = vadd.f32 %v351, %v361
  %v364 = vadd.f32 %v352, %v362
  %365 = vset.pattern.permute.xlu0 2
  %366 = vperm.xlu0 %365, %v339
  %v367 = vpop.permute.xlu0 %366
  %369 = vset.pattern.permute.xlu0 2
  %370 = vperm.xlu0 %369, %v340
  %v371 = vpop.permute.xlu0 %370
  %v373 = vmul.f32 %v367, %v62
  %v374 = vmul.f32 %v371, %v62
  %v375 = vadd.f32 %v363, %v373
  %v376 = vadd.f32 %v364, %v374
  %377 = vset.pattern.permute.xlu0 3
  %378 = vperm.xlu0 %377, %v339
  %v379 = vpop.permute.xlu0 %378
  %381 = vset.pattern.permute.xlu0 3
  %382 = vperm.xlu0 %381, %v340
  %v383 = vpop.permute.xlu0 %382
  %v385 = vadd.f32 %v375, %v379
  %v386 = vadd.f32 %v376, %v383
  %v387 = vmax.f32 %v385, 0.0
  %v388 = vmax.f32 %v386, 0.0
  %389 = vset.pattern.permute.xlu0 4
  %390 = vperm.xlu0 %389, %v339
  %v391 = vpop.permute.xlu0 %390
  %393 = vset.pattern.permute.xlu0 4
  %394 = vperm.xlu0 %393, %v340
  %v395 = vpop.permute.xlu0 %394
  %v397 = vmul.f32 %v387, %v391
  %v398 = vmul.f32 %v388, %v395
  %v399 = vadd.f32 %v337, %v397
  %v400 = vadd.f32 %v338, %v398
  %v401 = vld [vmem:[%s1 + $0x60] sm:$0xff]
  %v402 = vld [vmem:[%s1 + $0x68] sm:$0xff]
  %404 = vset.pattern.permute.xlu0 0
  %405 = vperm.xlu0 %404, %v401
  %v406 = vpop.permute.xlu0 %405
  %409 = vset.pattern.permute.xlu0 0
  %410 = vperm.xlu0 %409, %v402
  %v411 = vpop.permute.xlu0 %410
  %v413 = vmul.f32 %v406, %v32
  %v414 = vmul.f32 %v411, %v32
  %415 = vset.pattern.permute.xlu0 1
  %416 = vperm.xlu0 %415, %v401
  %v417 = vpop.permute.xlu0 %416
  %419 = vset.pattern.permute.xlu0 1
  %420 = vperm.xlu0 %419, %v402
  %v421 = vpop.permute.xlu0 %420
  %v423 = vmul.f32 %v417, %v46
  %v424 = vmul.f32 %v421, %v46
  %v425 = vadd.f32 %v413, %v423
  %v426 = vadd.f32 %v414, %v424
  %427 = vset.pattern.permute.xlu0 2
  %428 = vperm.xlu0 %427, %v401
  %v429 = vpop.permute.xlu0 %428
  %431 = vset.pattern.permute.xlu0 2
  %432 = vperm.xlu0 %431, %v402
  %v433 = vpop.permute.xlu0 %432
  %v435 = vmul.f32 %v429, %v62
  %v436 = vmul.f32 %v433, %v62
  %v437 = vadd.f32 %v425, %v435
  %v438 = vadd.f32 %v426, %v436
  %439 = vset.pattern.permute.xlu0 3
  %440 = vperm.xlu0 %439, %v401
  %v441 = vpop.permute.xlu0 %440
  %443 = vset.pattern.permute.xlu0 3
  %444 = vperm.xlu0 %443, %v402
  %v445 = vpop.permute.xlu0 %444
  %v447 = vadd.f32 %v437, %v441
  %v448 = vadd.f32 %v438, %v445
  %v449 = vmax.f32 %v447, 0.0
  %v450 = vmax.f32 %v448, 0.0
  %451 = vset.pattern.permute.xlu0 4
  %452 = vperm.xlu0 %451, %v401
  %v453 = vpop.permute.xlu0 %452
  %455 = vset.pattern.permute.xlu0 4
  %456 = vperm.xlu0 %455, %v402
  %v457 = vpop.permute.xlu0 %456
  %v459 = vmul.f32 %v449, %v453
  %v460 = vmul.f32 %v450, %v457
  %v461 = vadd.f32 %v399, %v459
  %v462 = vadd.f32 %v400, %v460
  %v463 = vld [vmem:[%s1 + $0x70] sm:$0xff]
  %v464 = vld [vmem:[%s1 + $0x78] sm:$0xff]
  %466 = vset.pattern.permute.xlu0 0
  %467 = vperm.xlu0 %466, %v463
  %v468 = vpop.permute.xlu0 %467
  %471 = vset.pattern.permute.xlu0 0
  %472 = vperm.xlu0 %471, %v464
  %v473 = vpop.permute.xlu0 %472
  %v475 = vmul.f32 %v468, %v32
  %v476 = vmul.f32 %v473, %v32
  %477 = vset.pattern.permute.xlu0 1
  %478 = vperm.xlu0 %477, %v463
  %v479 = vpop.permute.xlu0 %478
  %481 = vset.pattern.permute.xlu0 1
  %482 = vperm.xlu0 %481, %v464
  %v483 = vpop.permute.xlu0 %482
  %v485 = vmul.f32 %v479, %v46
  %v486 = vmul.f32 %v483, %v46
  %v487 = vadd.f32 %v475, %v485
  %v488 = vadd.f32 %v476, %v486
  %489 = vset.pattern.permute.xlu0 2
  %490 = vperm.xlu0 %489, %v463
  %v491 = vpop.permute.xlu0 %490
  %493 = vset.pattern.permute.xlu0 2
  %494 = vperm.xlu0 %493, %v464
  %v495 = vpop.permute.xlu0 %494
  %v497 = vmul.f32 %v491, %v62
  %v498 = vmul.f32 %v495, %v62
  %v499 = vadd.f32 %v487, %v497
  %v500 = vadd.f32 %v488, %v498
  %501 = vset.pattern.permute.xlu0 3
  %502 = vperm.xlu0 %501, %v463
  %v503 = vpop.permute.xlu0 %502
  %505 = vset.pattern.permute.xlu0 3
  %506 = vperm.xlu0 %505, %v464
  %v507 = vpop.permute.xlu0 %506
  %v509 = vadd.f32 %v499, %v503
  %v510 = vadd.f32 %v500, %v507
  %v511 = vmax.f32 %v509, 0.0
  %v512 = vmax.f32 %v510, 0.0
  %513 = vset.pattern.permute.xlu0 4
  %514 = vperm.xlu0 %513, %v463
  %v515 = vpop.permute.xlu0 %514
  %517 = vset.pattern.permute.xlu0 4
  %518 = vperm.xlu0 %517, %v464
  %v519 = vpop.permute.xlu0 %518
  %v521 = vmul.f32 %v511, %v515
  %v522 = vmul.f32 %v512, %v519
  %v523 = vadd.f32 %v461, %v521
  %v524 = vadd.f32 %v462, %v522
  %v525 = vld [vmem:[%s1 + $0x80] sm:$0xff]
  %v526 = vld [vmem:[%s1 + $0x88] sm:$0xff]
  %528 = vset.pattern.permute.xlu0 0
  %529 = vperm.xlu0 %528, %v525
  %v530 = vpop.permute.xlu0 %529
  %533 = vset.pattern.permute.xlu0 0
  %534 = vperm.xlu0 %533, %v526
  %v535 = vpop.permute.xlu0 %534
  %v537 = vmul.f32 %v530, %v32
  %v538 = vmul.f32 %v535, %v32
  %539 = vset.pattern.permute.xlu0 1
  %540 = vperm.xlu0 %539, %v525
  %v541 = vpop.permute.xlu0 %540
  %543 = vset.pattern.permute.xlu0 1
  %544 = vperm.xlu0 %543, %v526
  %v545 = vpop.permute.xlu0 %544
  %v547 = vmul.f32 %v541, %v46
  %v548 = vmul.f32 %v545, %v46
  %v549 = vadd.f32 %v537, %v547
  %v550 = vadd.f32 %v538, %v548
  %551 = vset.pattern.permute.xlu0 2
  %552 = vperm.xlu0 %551, %v525
  %v553 = vpop.permute.xlu0 %552
  %555 = vset.pattern.permute.xlu0 2
  %556 = vperm.xlu0 %555, %v526
  %v557 = vpop.permute.xlu0 %556
  %v559 = vmul.f32 %v553, %v62
  %v560 = vmul.f32 %v557, %v62
  %v561 = vadd.f32 %v549, %v559
  %v562 = vadd.f32 %v550, %v560
  %563 = vset.pattern.permute.xlu0 3
  %564 = vperm.xlu0 %563, %v525
  %v565 = vpop.permute.xlu0 %564
  %567 = vset.pattern.permute.xlu0 3
  %568 = vperm.xlu0 %567, %v526
  %v569 = vpop.permute.xlu0 %568
  %v571 = vadd.f32 %v561, %v565
  %v572 = vadd.f32 %v562, %v569
  %v573 = vmax.f32 %v571, 0.0
  %v574 = vmax.f32 %v572, 0.0
  %575 = vset.pattern.permute.xlu0 4
  %576 = vperm.xlu0 %575, %v525
  %v577 = vpop.permute.xlu0 %576
  %579 = vset.pattern.permute.xlu0 4
  %580 = vperm.xlu0 %579, %v526
  %v581 = vpop.permute.xlu0 %580
  %v583 = vmul.f32 %v573, %v577
  %v584 = vmul.f32 %v574, %v581
  %v585 = vadd.f32 %v523, %v583
  %v586 = vadd.f32 %v524, %v584
  %v587 = vld [vmem:[%s1 + $0x90] sm:$0xff]
  %v588 = vld [vmem:[%s1 + $0x98] sm:$0xff]
  %590 = vset.pattern.permute.xlu0 0
  %591 = vperm.xlu0 %590, %v587
  %v592 = vpop.permute.xlu0 %591
  %595 = vset.pattern.permute.xlu0 0
  %596 = vperm.xlu0 %595, %v588
  %v597 = vpop.permute.xlu0 %596
  %v599 = vmul.f32 %v592, %v32
  %v600 = vmul.f32 %v597, %v32
  %601 = vset.pattern.permute.xlu0 1
  %602 = vperm.xlu0 %601, %v587
  %v603 = vpop.permute.xlu0 %602
  %605 = vset.pattern.permute.xlu0 1
  %606 = vperm.xlu0 %605, %v588
  %v607 = vpop.permute.xlu0 %606
  %v609 = vmul.f32 %v603, %v46
  %v610 = vmul.f32 %v607, %v46
  %v611 = vadd.f32 %v599, %v609
  %v612 = vadd.f32 %v600, %v610
  %613 = vset.pattern.permute.xlu0 2
  %614 = vperm.xlu0 %613, %v587
  %v615 = vpop.permute.xlu0 %614
  %617 = vset.pattern.permute.xlu0 2
  %618 = vperm.xlu0 %617, %v588
  %v619 = vpop.permute.xlu0 %618
  %v621 = vmul.f32 %v615, %v62
  %v622 = vmul.f32 %v619, %v62
  %v623 = vadd.f32 %v611, %v621
  %v624 = vadd.f32 %v612, %v622
  %625 = vset.pattern.permute.xlu0 3
  %626 = vperm.xlu0 %625, %v587
  %v627 = vpop.permute.xlu0 %626
  %629 = vset.pattern.permute.xlu0 3
  %630 = vperm.xlu0 %629, %v588
  %v631 = vpop.permute.xlu0 %630
  %v633 = vadd.f32 %v623, %v627
  %v634 = vadd.f32 %v624, %v631
  %v635 = vmax.f32 %v633, 0.0
  %v636 = vmax.f32 %v634, 0.0
  %637 = vset.pattern.permute.xlu0 4
  %638 = vperm.xlu0 %637, %v587
  %v639 = vpop.permute.xlu0 %638
  %641 = vset.pattern.permute.xlu0 4
  %642 = vperm.xlu0 %641, %v588
  %v643 = vpop.permute.xlu0 %642
  %v645 = vmul.f32 %v635, %v639
  %v646 = vmul.f32 %v636, %v643
  %v647 = vadd.f32 %v585, %v645
  %v648 = vadd.f32 %v586, %v646
  %v649 = vld [vmem:[%s1 + $0xa0] sm:$0xff]
  %v650 = vld [vmem:[%s1 + $0xa8] sm:$0xff]
  %652 = vset.pattern.permute.xlu0 0
  %653 = vperm.xlu0 %652, %v649
  %v654 = vpop.permute.xlu0 %653
  %657 = vset.pattern.permute.xlu0 0
  %658 = vperm.xlu0 %657, %v650
  %v659 = vpop.permute.xlu0 %658
  %v661 = vmul.f32 %v654, %v32
  %v662 = vmul.f32 %v659, %v32
  %663 = vset.pattern.permute.xlu0 1
  %664 = vperm.xlu0 %663, %v649
  %v665 = vpop.permute.xlu0 %664
  %667 = vset.pattern.permute.xlu0 1
  %668 = vperm.xlu0 %667, %v650
  %v669 = vpop.permute.xlu0 %668
  %v671 = vmul.f32 %v665, %v46
  %v672 = vmul.f32 %v669, %v46
  %v673 = vadd.f32 %v661, %v671
  %v674 = vadd.f32 %v662, %v672
  %675 = vset.pattern.permute.xlu0 2
  %676 = vperm.xlu0 %675, %v649
  %v677 = vpop.permute.xlu0 %676
  %679 = vset.pattern.permute.xlu0 2
  %680 = vperm.xlu0 %679, %v650
  %v681 = vpop.permute.xlu0 %680
  %v683 = vmul.f32 %v677, %v62
  %v684 = vmul.f32 %v681, %v62
  %v685 = vadd.f32 %v673, %v683
  %v686 = vadd.f32 %v674, %v684
  %687 = vset.pattern.permute.xlu0 3
  %688 = vperm.xlu0 %687, %v649
  %v689 = vpop.permute.xlu0 %688
  %691 = vset.pattern.permute.xlu0 3
  %692 = vperm.xlu0 %691, %v650
  %v693 = vpop.permute.xlu0 %692
  %v695 = vadd.f32 %v685, %v689
  %v696 = vadd.f32 %v686, %v693
  %v697 = vmax.f32 %v695, 0.0
  %v698 = vmax.f32 %v696, 0.0
  %699 = vset.pattern.permute.xlu0 4
  %700 = vperm.xlu0 %699, %v649
  %v701 = vpop.permute.xlu0 %700
  %703 = vset.pattern.permute.xlu0 4
  %704 = vperm.xlu0 %703, %v650
  %v705 = vpop.permute.xlu0 %704
  %v707 = vmul.f32 %v697, %v701
  %v708 = vmul.f32 %v698, %v705
  %v709 = vadd.f32 %v647, %v707
  %v710 = vadd.f32 %v648, %v708
  %v711 = vld [vmem:[%s1 + $0xb0] sm:$0xff]
  %v712 = vld [vmem:[%s1 + $0xb8] sm:$0xff]
  %714 = vset.pattern.permute.xlu0 0
  %715 = vperm.xlu0 %714, %v711
  %v716 = vpop.permute.xlu0 %715
  %719 = vset.pattern.permute.xlu0 0
  %720 = vperm.xlu0 %719, %v712
  %v721 = vpop.permute.xlu0 %720
  %v723 = vmul.f32 %v716, %v32
  %v724 = vmul.f32 %v721, %v32
  %725 = vset.pattern.permute.xlu0 1
  %726 = vperm.xlu0 %725, %v711
  %v727 = vpop.permute.xlu0 %726
  %729 = vset.pattern.permute.xlu0 1
  %730 = vperm.xlu0 %729, %v712
  %v731 = vpop.permute.xlu0 %730
  %v733 = vmul.f32 %v727, %v46
  %v734 = vmul.f32 %v731, %v46
  %v735 = vadd.f32 %v723, %v733
  %v736 = vadd.f32 %v724, %v734
  %737 = vset.pattern.permute.xlu0 2
  %738 = vperm.xlu0 %737, %v711
  %v739 = vpop.permute.xlu0 %738
  %741 = vset.pattern.permute.xlu0 2
  %742 = vperm.xlu0 %741, %v712
  %v743 = vpop.permute.xlu0 %742
  %v745 = vmul.f32 %v739, %v62
  %v746 = vmul.f32 %v743, %v62
  %v747 = vadd.f32 %v735, %v745
  %v748 = vadd.f32 %v736, %v746
  %749 = vset.pattern.permute.xlu0 3
  %750 = vperm.xlu0 %749, %v711
  %v751 = vpop.permute.xlu0 %750
  %753 = vset.pattern.permute.xlu0 3
  %754 = vperm.xlu0 %753, %v712
  %v755 = vpop.permute.xlu0 %754
  %v757 = vadd.f32 %v747, %v751
  %v758 = vadd.f32 %v748, %v755
  %v759 = vmax.f32 %v757, 0.0
  %v760 = vmax.f32 %v758, 0.0
  %761 = vset.pattern.permute.xlu0 4
  %762 = vperm.xlu0 %761, %v711
  %v763 = vpop.permute.xlu0 %762
  %765 = vset.pattern.permute.xlu0 4
  %766 = vperm.xlu0 %765, %v712
  %v767 = vpop.permute.xlu0 %766
  %v769 = vmul.f32 %v759, %v763
  %v770 = vmul.f32 %v760, %v767
  %v771 = vadd.f32 %v709, %v769
  %v772 = vadd.f32 %v710, %v770
  %v773 = vld [vmem:[%s1 + $0xc0] sm:$0xff]
  %v774 = vld [vmem:[%s1 + $0xc8] sm:$0xff]
  %776 = vset.pattern.permute.xlu0 0
  %777 = vperm.xlu0 %776, %v773
  %v778 = vpop.permute.xlu0 %777
  %781 = vset.pattern.permute.xlu0 0
  %782 = vperm.xlu0 %781, %v774
  %v783 = vpop.permute.xlu0 %782
  %v785 = vmul.f32 %v778, %v32
  %v786 = vmul.f32 %v783, %v32
  %787 = vset.pattern.permute.xlu0 1
  %788 = vperm.xlu0 %787, %v773
  %v789 = vpop.permute.xlu0 %788
  %791 = vset.pattern.permute.xlu0 1
  %792 = vperm.xlu0 %791, %v774
  %v793 = vpop.permute.xlu0 %792
  %v795 = vmul.f32 %v789, %v46
  %v796 = vmul.f32 %v793, %v46
  %v797 = vadd.f32 %v785, %v795
  %v798 = vadd.f32 %v786, %v796
  %799 = vset.pattern.permute.xlu0 2
  %800 = vperm.xlu0 %799, %v773
  %v801 = vpop.permute.xlu0 %800
  %803 = vset.pattern.permute.xlu0 2
  %804 = vperm.xlu0 %803, %v774
  %v805 = vpop.permute.xlu0 %804
  %v807 = vmul.f32 %v801, %v62
  %v808 = vmul.f32 %v805, %v62
  %v809 = vadd.f32 %v797, %v807
  %v810 = vadd.f32 %v798, %v808
  %811 = vset.pattern.permute.xlu0 3
  %812 = vperm.xlu0 %811, %v773
  %v813 = vpop.permute.xlu0 %812
  %815 = vset.pattern.permute.xlu0 3
  %816 = vperm.xlu0 %815, %v774
  %v817 = vpop.permute.xlu0 %816
  %v819 = vadd.f32 %v809, %v813
  %v820 = vadd.f32 %v810, %v817
  %v821 = vmax.f32 %v819, 0.0
  %v822 = vmax.f32 %v820, 0.0
  %823 = vset.pattern.permute.xlu0 4
  %824 = vperm.xlu0 %823, %v773
  %v825 = vpop.permute.xlu0 %824
  %827 = vset.pattern.permute.xlu0 4
  %828 = vperm.xlu0 %827, %v774
  %v829 = vpop.permute.xlu0 %828
  %v831 = vmul.f32 %v821, %v825
  %v832 = vmul.f32 %v822, %v829
  %v833 = vadd.f32 %v771, %v831
  %v834 = vadd.f32 %v772, %v832
  %v835 = vld [vmem:[%s1 + $0xd0] sm:$0xff]
  %v836 = vld [vmem:[%s1 + $0xd8] sm:$0xff]
  %838 = vset.pattern.permute.xlu0 0
  %839 = vperm.xlu0 %838, %v835
  %v840 = vpop.permute.xlu0 %839
  %843 = vset.pattern.permute.xlu0 0
  %844 = vperm.xlu0 %843, %v836
  %v845 = vpop.permute.xlu0 %844
  %v847 = vmul.f32 %v840, %v32
  %v848 = vmul.f32 %v845, %v32
  %849 = vset.pattern.permute.xlu0 1
  %850 = vperm.xlu0 %849, %v835
  %v851 = vpop.permute.xlu0 %850
  %853 = vset.pattern.permute.xlu0 1
  %854 = vperm.xlu0 %853, %v836
  %v855 = vpop.permute.xlu0 %854
  %v857 = vmul.f32 %v851, %v46
  %v858 = vmul.f32 %v855, %v46
  %v859 = vadd.f32 %v847, %v857
  %v860 = vadd.f32 %v848, %v858
  %861 = vset.pattern.permute.xlu0 2
  %862 = vperm.xlu0 %861, %v835
  %v863 = vpop.permute.xlu0 %862
  %865 = vset.pattern.permute.xlu0 2
  %866 = vperm.xlu0 %865, %v836
  %v867 = vpop.permute.xlu0 %866
  %v869 = vmul.f32 %v863, %v62
  %v870 = vmul.f32 %v867, %v62
  %v871 = vadd.f32 %v859, %v869
  %v872 = vadd.f32 %v860, %v870
  %873 = vset.pattern.permute.xlu0 3
  %874 = vperm.xlu0 %873, %v835
  %v875 = vpop.permute.xlu0 %874
  %877 = vset.pattern.permute.xlu0 3
  %878 = vperm.xlu0 %877, %v836
  %v879 = vpop.permute.xlu0 %878
  %v881 = vadd.f32 %v871, %v875
  %v882 = vadd.f32 %v872, %v879
  %v883 = vmax.f32 %v881, 0.0
  %v884 = vmax.f32 %v882, 0.0
  %885 = vset.pattern.permute.xlu0 4
  %886 = vperm.xlu0 %885, %v835
  %v887 = vpop.permute.xlu0 %886
  %889 = vset.pattern.permute.xlu0 4
  %890 = vperm.xlu0 %889, %v836
  %v891 = vpop.permute.xlu0 %890
  %v893 = vmul.f32 %v883, %v887
  %v894 = vmul.f32 %v884, %v891
  %v895 = vadd.f32 %v833, %v893
  %v896 = vadd.f32 %v834, %v894
  %v897 = vld [vmem:[%s1 + $0xe0] sm:$0xff]
  %v898 = vld [vmem:[%s1 + $0xe8] sm:$0xff]
  %900 = vset.pattern.permute.xlu0 0
  %901 = vperm.xlu0 %900, %v897
  %v902 = vpop.permute.xlu0 %901
  %905 = vset.pattern.permute.xlu0 0
  %906 = vperm.xlu0 %905, %v898
  %v907 = vpop.permute.xlu0 %906
  %v909 = vmul.f32 %v902, %v32
  %v910 = vmul.f32 %v907, %v32
  %911 = vset.pattern.permute.xlu0 1
  %912 = vperm.xlu0 %911, %v897
  %v913 = vpop.permute.xlu0 %912
  %915 = vset.pattern.permute.xlu0 1
  %916 = vperm.xlu0 %915, %v898
  %v917 = vpop.permute.xlu0 %916
  %v919 = vmul.f32 %v913, %v46
  %v920 = vmul.f32 %v917, %v46
  %v921 = vadd.f32 %v909, %v919
  %v922 = vadd.f32 %v910, %v920
  %923 = vset.pattern.permute.xlu0 2
  %924 = vperm.xlu0 %923, %v897
  %v925 = vpop.permute.xlu0 %924
  %927 = vset.pattern.permute.xlu0 2
  %928 = vperm.xlu0 %927, %v898
  %v929 = vpop.permute.xlu0 %928
  %v931 = vmul.f32 %v925, %v62
  %v932 = vmul.f32 %v929, %v62
  %v933 = vadd.f32 %v921, %v931
  %v934 = vadd.f32 %v922, %v932
  %935 = vset.pattern.permute.xlu0 3
  %936 = vperm.xlu0 %935, %v897
  %v937 = vpop.permute.xlu0 %936
  %939 = vset.pattern.permute.xlu0 3
  %940 = vperm.xlu0 %939, %v898
  %v941 = vpop.permute.xlu0 %940
  %v943 = vadd.f32 %v933, %v937
  %v944 = vadd.f32 %v934, %v941
  %v945 = vmax.f32 %v943, 0.0
  %v946 = vmax.f32 %v944, 0.0
  %947 = vset.pattern.permute.xlu0 4
  %948 = vperm.xlu0 %947, %v897
  %v949 = vpop.permute.xlu0 %948
  %951 = vset.pattern.permute.xlu0 4
  %952 = vperm.xlu0 %951, %v898
  %v953 = vpop.permute.xlu0 %952
  %v955 = vmul.f32 %v945, %v949
  %v956 = vmul.f32 %v946, %v953
  %v957 = vadd.f32 %v895, %v955
  %v958 = vadd.f32 %v896, %v956
  %v959 = vld [vmem:[%s1 + $0xf0] sm:$0xff]
  %v960 = vld [vmem:[%s1 + $0xf8] sm:$0xff]
  %962 = vset.pattern.permute.xlu0 0
  %963 = vperm.xlu0 %962, %v959
  %v964 = vpop.permute.xlu0 %963
  %967 = vset.pattern.permute.xlu0 0
  %968 = vperm.xlu0 %967, %v960
  %v969 = vpop.permute.xlu0 %968
  %v971 = vmul.f32 %v964, %v32
  %v972 = vmul.f32 %v969, %v32
  %973 = vset.pattern.permute.xlu0 1
  %974 = vperm.xlu0 %973, %v959
  %v975 = vpop.permute.xlu0 %974
  %977 = vset.pattern.permute.xlu0 1
  %978 = vperm.xlu0 %977, %v960
  %v979 = vpop.permute.xlu0 %978
  %v981 = vmul.f32 %v975, %v46
  %v982 = vmul.f32 %v979, %v46
  %v983 = vadd.f32 %v971, %v981
  %v984 = vadd.f32 %v972, %v982
  %985 = vset.pattern.permute.xlu0 2
  %986 = vperm.xlu0 %985, %v959
  %v987 = vpop.permute.xlu0 %986
  %989 = vset.pattern.permute.xlu0 2
  %990 = vperm.xlu0 %989, %v960
  %v991 = vpop.permute.xlu0 %990
  %v993 = vmul.f32 %v987, %v62
  %v994 = vmul.f32 %v991, %v62
  %v995 = vadd.f32 %v983, %v993
  %v996 = vadd.f32 %v984, %v994
  %997 = vset.pattern.permute.xlu0 3
  %998 = vperm.xlu0 %997, %v959
  %v999 = vpop.permute.xlu0 %998
  %1001 = vset.pattern.permute.xlu0 3
  %1002 = vperm.xlu0 %1001, %v960
  %v1003 = vpop.permute.xlu0 %1002
  %v1005 = vadd.f32 %v995, %v999
  %v1006 = vadd.f32 %v996, %v1003
  %v1007 = vmax.f32 %v1005, 0.0
  %v1008 = vmax.f32 %v1006, 0.0
  %1009 = vset.pattern.permute.xlu0 4
  %1010 = vperm.xlu0 %1009, %v959
  %v1011 = vpop.permute.xlu0 %1010
  %1013 = vset.pattern.permute.xlu0 4
  %1014 = vperm.xlu0 %1013, %v960
  %v1015 = vpop.permute.xlu0 %1014
  %v1017 = vmul.f32 %v1007, %v1011
  %v1018 = vmul.f32 %v1008, %v1015
  %v1019 = vadd.f32 %v957, %v1017
  %v1020 = vadd.f32 %v958, %v1018
  %v1021 = vadd.f32 %v1019, %v1020
  %v1022 = vrot.slane %v1021, 4
  %v1023 = vadd.f32 %v1021, %v1022
  %v1024 = vrot.slane %v1023, 2
  %v1025 = vadd.f32 %v1023, %v1024
  %v1026 = vrot.slane %v1025, 1
  %v1027 = vadd.f32 %v1025, %v1026
  %v1028 = vstv %s15
  %v1029 = vadd.f32 %v1027, %v1028
  %v1030 = vtanh.pop %v1029
  %v1031 = vmul.f32 %v1030, 2.0
  %1032 = vst [vmem:[%s3] sm:$0x1] %v1031
  // Predicated region
  $region14: #{actor_forward.1} parent=0 // pred_check
    _
  $region15: #{actor_forward.1} parent=0 // pred_check_branch
    %1034 = sbr.rel (0) target = $region17
  $region16: #{actor_forward.1} parent=0 // pred_region
    _
  $region17: #{actor_forward.1} parent=0 // pred_fallthru
    _
  // Predicated region
  $region18: #{actor_forward.1} parent=0 // pred_check
    _
  $region19: #{actor_forward.1} parent=0 // pred_check_branch
    %1036 = sbr.rel (0) target = $region21
  $region20: #{actor_forward.1} parent=0 // pred_region
    _
  $region21: #{actor_forward.1} parent=0 // pred_fallthru
    _

</llo_original>
